<compile_context>
chip_gen: v7x
topology: tpu7x:2x2x1
jax: 0.10.0
libtpu: 0.0.40
codegen_flags: <defaults>
</compile_context>

<pallas_src>
import functools

import jax
import jax.numpy as jnp
from jax.experimental import pallas as pl
from jax.experimental.pallas import tpu as pltpu

EPS = 1e-5  # PyTorch BatchNorm default


def _round_up(x, m):
    return (x + m - 1) // m * m


# ----------------------------- Pallas kernels --------------------------------

def gemm_bn_relu_kernel(a_ref, b_ref, gamma_ref, beta_ref, o_ref, *,
                        groups, m_valid):
    """Fused  y = A @ B  ->  BatchNorm2d (training-mode batch stats) -> ReLU.

    Columns of y are `groups` parity groups of width Cg; conv channel c lives
    at columns {g*Cg + c}.  Rows >= m_valid are zero padding and are excluded
    from the statistics via a static slice (m_valid is compile-time known).
    """
    y = jnp.dot(a_ref[...], b_ref[...], preferred_element_type=jnp.float32)
    cg = y.shape[1] // groups
    yv = y[:m_valid]                                    # static slice
    cnt = jnp.float32(groups * m_valid)

    gsum = yv[:, 0:cg]
    for g in range(1, groups):
        gsum = gsum + yv[:, g * cg:(g + 1) * cg]
    mean = jnp.sum(gsum, axis=0, keepdims=True) / cnt   # (1, Cg)

    ssq = jnp.sum(jnp.square(yv[:, 0:cg] - mean), axis=0, keepdims=True)
    for g in range(1, groups):
        ssq = ssq + jnp.sum(jnp.square(yv[:, g * cg:(g + 1) * cg] - mean),
                            axis=0, keepdims=True)
    rstd = jax.lax.rsqrt(ssq / cnt + EPS)               # (1, Cg)

    scale = gamma_ref[...] * rstd                       # (1, Cg)
    shift = beta_ref[...] - mean * scale
    if groups > 1:                                      # tile to (1, G*Cg)
        scale = jnp.concatenate([scale] * groups, axis=1)
        shift = jnp.concatenate([shift] * groups, axis=1)
    o_ref[...] = jnp.maximum(y * scale + shift, 0.0)


def gemm_bias_sigmoid_kernel(a_ref, b_ref, bias_ref, o_ref):
    y = jnp.dot(a_ref[...], b_ref[...], preferred_element_type=jnp.float32)
    o_ref[...] = jax.nn.sigmoid(y + bias_ref[...])


# ----------------------------- pallas wrappers --------------------------------

def fused_gemm_bn_relu(A, B, gamma, beta, *, m_valid, groups):
    Mp, Kp = A.shape
    Cp = B.shape[1]
    cg = Cp // groups
    kernel = functools.partial(gemm_bn_relu_kernel, groups=groups,
                               m_valid=m_valid)
    return pl.pallas_call(
        kernel,
        out_shape=jax.ShapeDtypeStruct((Mp, Cp), jnp.float32),
        grid=(1,),
        in_specs=[
            pl.BlockSpec((Mp, Kp), lambda i: (0, 0)),
            pl.BlockSpec((Kp, Cp), lambda i: (0, 0)),
            pl.BlockSpec((1, cg), lambda i: (0, 0)),
            pl.BlockSpec((1, cg), lambda i: (0, 0)),
        ],
        out_specs=pl.BlockSpec((Mp, Cp), lambda i: (0, 0)),
        compiler_params=pltpu.CompilerParams(dimension_semantics=("arbitrary",)),
    )(A, B, gamma, beta)


def fused_gemm_bias_sigmoid(A, B, bias, *, block_rows):
    Mp, Kp = A.shape
    Cp = B.shape[1]
    return pl.pallas_call(
        gemm_bias_sigmoid_kernel,
        out_shape=jax.ShapeDtypeStruct((Mp, Cp), jnp.float32),
        grid=(Mp // block_rows,),
        in_specs=[
            pl.BlockSpec((block_rows, Kp), lambda i: (i, 0)),
            pl.BlockSpec((Kp, Cp), lambda i: (0, 0)),
            pl.BlockSpec((1, Cp), lambda i: (0, 0)),
        ],
        out_specs=pl.BlockSpec((block_rows, Cp), lambda i: (i, 0)),
        compiler_params=pltpu.CompilerParams(dimension_semantics=("parallel",)),
    )(A, B, bias)


# --------------------- sub-pixel ConvTranspose (stride 2) ---------------------
# ConvTranspose2d:  y[n, 2q+a, 2r+b, co] = sum x[n, ih, iw, ci] * W[ci,co,kh,kw]
# with kh = 2*(q - ih) + a + p.  For each output parity a only two taps exist:
# kh = e_a + 2*d (d in {0,1}), ih = q + base_a - d, e_a=(a+p)%2, base_a=(a+p)//2.

def subpixel_offsets(pad):
    return sorted({(a + pad) // 2 - d for a in (0, 1) for d in (0, 1)})


def subpixel_wmat(W, pad):
    """ConvTranspose2d weight (Cin, Cout, 4, 4), stride 2 -> GEMM weight
    (noff*noff*Cin, 4*Cout); rows ordered (i_off, j_off, ci), cols ordered
    (parity = 2a + b, co).  Unused (offset, parity) slots stay zero."""
    Cin, Cout, K, _ = W.shape
    offs = subpixel_offsets(pad)
    noff = len(offs)
    Wfull = jnp.zeros((noff, noff, Cin, 4, Cout), W.dtype)
    for a in (0, 1):
        e_h, base_h = (a + pad) % 2, (a + pad) // 2
        for b in (0, 1):
            e_w, base_w = (b + pad) % 2, (b + pad) // 2
            for dh in (0, 1):
                for dw in (0, 1):
                    i = offs.index(base_h - dh)
                    j = offs.index(base_w - dw)
                    Wfull = Wfull.at[i, j, :, 2 * a + b, :].set(
                        W[:, :, e_h + 2 * dh, e_w + 2 * dw])
    return Wfull.reshape(noff * noff * Cin, 4 * Cout)


def subpixel_patches(x_nhwc, *, pad):
    """x: (N, H, H, C) NHWC -> patches (N*Q*Q, noff*noff*C), Q = OH // 2."""
    N, H, Wd, C = x_nhwc.shape
    assert H == Wd
    offs = subpixel_offsets(pad)
    Q = H + 1 - pad
    lo = max(0, -offs[0])
    hi = max(0, Q - 1 + offs[-1] - (H - 1))
    xp = jnp.pad(x_nhwc, ((0, 0), (lo, hi), (lo, hi), (0, 0)))
    rows = []
    for oi in offs:
        cols = []
        for oj in offs:
            cols.append(xp[:, oi + lo:oi + lo + Q, oj + lo:oj + lo + Q, :])
        rows.append(jnp.stack(cols, axis=3))            # (N, Q, Q, noff, C)
    P = jnp.stack(rows, axis=3)                         # (N, Q, Q, noff, noff, C)
    return P.reshape(N * Q * Q, len(offs) * len(offs) * C), Q


def pixel_shuffle(y, N, Q, cout):
    """(N*Q*Q, 4*cout) parity-packed -> (N, 2Q, 2Q, cout) NHWC."""
    y = y.reshape(N, Q, Q, 2, 2, cout).transpose(0, 1, 3, 2, 4, 5)
    return y.reshape(N, 2 * Q, 2 * Q, cout)


# --------------------------- parameter preparation ----------------------------

def prepare_params(p):
    """One-time repack of PyTorch-layout params into GEMM-ready, lane-padded
    operands (hoisted out of the per-call forward)."""
    f32 = jnp.float32
    w = {}
    # layer 1: ConvT(2->64,k4,s1,p0) on a 1x1 input is a single GEMM.
    # Conv bias b1 is dropped (cancelled by training-mode BN); BN affine is
    # zero-padded to 128 lanes.
    B1 = p['W1'].astype(f32).transpose(2, 3, 0, 1).reshape(16 * 2, 64)
    w['B1'] = jnp.pad(B1, ((0, 128 - 32), (0, 128 - 64)))
    w['g1'] = jnp.pad(p['g1'].reshape(1, 64), ((0, 0), (0, 64)))
    w['bt1'] = jnp.pad(p['bt1'].reshape(1, 64), ((0, 0), (0, 64)))
    # layers 2-4: stride-2 sub-pixel GEMM weights (parity-packed columns).
    w['B2'] = subpixel_wmat(p['W2'].astype(f32), 2)      # (256, 256)
    w['g2'], w['bt2'] = p['g2'].reshape(1, 64), p['bt2'].reshape(1, 64)
    w['B3'] = subpixel_wmat(p['W3'].astype(f32), 0)      # (256, 128)
    w['g3'], w['bt3'] = p['g3'].reshape(1, 32), p['bt3'].reshape(1, 32)
    B4 = subpixel_wmat(p['W4'].astype(f32), 1)           # (288, 4)
    w['B4'] = jnp.pad(B4, ((0, 384 - 288), (0, 128 - 4)))
    w['bias4'] = jnp.zeros((1, 128), f32).at[0, :4].set(p['b4'][0])
    return w


# --------------------------- Decoder forward ----------------------------------

def _convt_bn_relu(h, B, gamma, beta, *, pad, cout):
    N = h.shape[0]
    P, Q = subpixel_patches(h, pad=pad)
    M = N * Q * Q
    Mp = _round_up(M, 8)
    A = jnp.pad(P, ((0, Mp - M), (0, B.shape[0] - P.shape[1])))
    y = fused_gemm_bn_relu(A, B, gamma, beta, m_valid=M, groups=4)
    return pixel_shuffle(y[:M], N, Q, cout)


def decoder_forward(x, w):
    """x: (N, 2, 1, 1) latent -> (N, 784), matching PyTorch Decoder.forward."""
    N = x.shape[0]
    f32 = jnp.float32
    # ---- layer 1: ConvT(2->64,k4,s1,p0) + BN + ReLU      -> (N, 4, 4, 64) ---
    x2 = x.reshape(N, 2).astype(f32)
    # patch row (n, oh, ow) holds x[n, :] in tap slot (kh, kw) = (oh, ow)
    A1 = (jnp.eye(16, dtype=f32)[None, :, :, None] * x2[:, None, None, :])
    A1 = A1.reshape(N * 16, 32)
    A1 = jnp.pad(A1, ((0, _round_up(N * 16, 8) - N * 16), (0, 128 - 32)))
    y1 = fused_gemm_bn_relu(A1, w['B1'], w['g1'], w['bt1'],
                            m_valid=N * 16, groups=1)
    h = y1[:N * 16, :64].reshape(N, 4, 4, 64)
    # ---- layer 2: ConvT(64->64,k4,s2,p2) + BN + ReLU     -> (N, 6, 6, 64) ---
    h = _convt_bn_relu(h, w['B2'], w['g2'], w['bt2'], pad=2, cout=64)
    # ---- layer 3: ConvT(64->32,k4,s2,p0) + BN + ReLU     -> (N,14,14,32) ----
    h = _convt_bn_relu(h, w['B3'], w['g3'], w['bt3'], pad=0, cout=32)
    # ---- layer 4: ConvT(32->1,k4,s2,p1) + Flatten + Sigmoid -> (N, 784) -----
    P, Q = subpixel_patches(h, pad=1)                    # (N*196, 288)
    M = N * Q * Q
    Mp = _round_up(M, 16)                                # 2 row blocks of Mp//2
    A = jnp.pad(P, ((0, Mp - M), (0, w['B4'].shape[0] - P.shape[1])))
    y = fused_gemm_bias_sigmoid(A, w['B4'], w['bias4'], block_rows=Mp // 2)
    out = pixel_shuffle(y[:M, :4], N, Q, 1)              # (N, 28, 28, 1)
    return out.reshape(N, (2 * Q) * (2 * Q))


# --------------------------- pure-JAX reference --------------------------------

def conv_transpose_ref(x, W, b, stride, pad):
    K = W.shape[2]
    Wc = W[:, :, ::-1, ::-1].transpose(1, 0, 2, 3)  # (Cout, Cin, K, K)
    pe = K - 1 - pad
    y = jax.lax.conv_general_dilated(
        x, Wc, window_strides=(1, 1), padding=[(pe, pe), (pe, pe)],
        lhs_dilation=(stride, stride),
        dimension_numbers=('NCHW', 'OIHW', 'NCHW'))
    return y + b.reshape(1, -1, 1, 1)


def bn_relu_ref(x, gamma, beta):
    mean = x.mean(axis=(0, 2, 3), keepdims=True)
    var = x.var(axis=(0, 2, 3), keepdims=True)  # biased, BN training mode
    xh = (x - mean) * jax.lax.rsqrt(var + EPS)
    return jnp.maximum(xh * gamma.reshape(1, -1, 1, 1) + beta.reshape(1, -1, 1, 1), 0.0)


def decoder_ref(x, p):
    h = bn_relu_ref(conv_transpose_ref(x, p['W1'], p['b1'], 1, 0), p['g1'], p['bt1'])
    h = bn_relu_ref(conv_transpose_ref(h, p['W2'], p['b2'], 2, 2), p['g2'], p['bt2'])
    h = bn_relu_ref(conv_transpose_ref(h, p['W3'], p['b3'], 2, 0), p['g3'], p['bt3'])
    h = conv_transpose_ref(h, p['W4'], p['b4'], 2, 1)
    return jax.nn.sigmoid(h.reshape(h.shape[0], -1))


# --------------------------- main ----------------------------------------------

def init_params(key):
    ks = jax.random.split(key, 8)
    def w(k, shape, fan_in):
        return (jax.random.uniform(k, shape, jnp.float32, -1.0, 1.0)
                / jnp.sqrt(jnp.float32(fan_in)))
    p = {
        'W1': w(ks[0], (2, 64, 4, 4), 2 * 16),   'b1': w(ks[1], (64,), 2 * 16),
        'W2': w(ks[2], (64, 64, 4, 4), 64 * 16), 'b2': w(ks[3], (64,), 64 * 16),
        'W3': w(ks[4], (64, 32, 4, 4), 64 * 16), 'b3': w(ks[5], (32,), 64 * 16),
        'W4': w(ks[6], (32, 1, 4, 4), 32 * 16),  'b4': w(ks[7], (1,), 32 * 16),
        'g1': jnp.ones((64,), jnp.float32), 'bt1': jnp.zeros((64,), jnp.float32),
        'g2': jnp.ones((64,), jnp.float32), 'bt2': jnp.zeros((64,), jnp.float32),
        'g3': jnp.ones((32,), jnp.float32), 'bt3': jnp.zeros((32,), jnp.float32),
    }
    return p


if __name__ == "__main__":
    key = jax.random.PRNGKey(0)
    k_p, k_x = jax.random.split(key)
    params = init_params(k_p)
    x = jax.random.normal(k_x, (2, 2, 1, 1), jnp.float32)  # (N, 2, 1, 1) latent

    prepped = prepare_params(params)                     # one-time weight repack
    out = jax.jit(decoder_forward)(x, prepped)
    out = jax.block_until_ready(out)
    ref = jax.block_until_ready(decoder_ref(x, params))  # reference keeps conv biases

    assert out.shape == (2, 784), out.shape
    assert bool(jnp.all(jnp.isfinite(out)))
    assert bool(jnp.allclose(out, ref, rtol=2e-3, atol=2e-3)), \
        float(jnp.max(jnp.abs(out - ref)))
    print("KERNEL_OK")
</pallas_src>

<mosaic_0001>
module attributes {stable_mosaic.version = 11 : i64} {
  func.func @gemm_bn_relu_kernel(%arg0: i32, %arg1: memref<32x128xf32, #tpu.memory_space<vmem>>, %arg2: memref<128x128xf32, #tpu.memory_space<vmem>>, %arg3: memref<1x128xf32, #tpu.memory_space<vmem>>, %arg4: memref<1x128xf32, #tpu.memory_space<vmem>>, %arg5: memref<32x128xf32, #tpu.memory_space<vmem>>) attributes {dimension_semantics = [#tpu.dimension_semantics<arbitrary>], iteration_bounds = array<i64: 1>, scalar_prefetch = 0 : i64, scratch_operands = 0 : i64, tpu.core_type = #tpu.core_type<tc>, window_params = [{pipeline_mode = #tpu.pipeline_mode<synchronous>, transform_indices = @transform_0, window_bounds = array<i64: 32, 128>}, {pipeline_mode = #tpu.pipeline_mode<synchronous>, transform_indices = @transform_1, window_bounds = array<i64: 128, 128>}, {pipeline_mode = #tpu.pipeline_mode<synchronous>, transform_indices = @transform_2, window_bounds = array<i64: 1, 128>}, {pipeline_mode = #tpu.pipeline_mode<synchronous>, transform_indices = @transform_3, window_bounds = array<i64: 1, 128>}, {pipeline_mode = #tpu.pipeline_mode<synchronous>, transform_indices = @transform_4, window_bounds = array<i64: 32, 128>}]} {
    %c0 = arith.constant 0 : index
    %c0_0 = arith.constant 0 : index
    %0 = vector.load %arg1[%c0, %c0_0] : memref<32x128xf32, #tpu.memory_space<vmem>>, vector<32x128xf32>
    %c0_1 = arith.constant 0 : index
    %c0_2 = arith.constant 0 : index
    %1 = vector.load %arg2[%c0_1, %c0_2] : memref<128x128xf32, #tpu.memory_space<vmem>>, vector<128x128xf32>
    %cst = arith.constant dense<0.000000e+00> : vector<32x128xf32>
    %2 = tpu.matmul %0, %1, %cst {dimension_numbers = #tpu.dot_dimension_numbers<[1], [0], [0], [1], [0, 0, 1, 1], [], []>} : vector<32x128xf32>, vector<128x128xf32>, vector<32x128xf32> -> vector<32x128xf32>
    %cst_3 = arith.constant dense<0.000000e+00> : vector<128xf32>
    %3 = vector.multi_reduction <add>, %2, %cst_3 [0] : vector<32x128xf32> to vector<128xf32>
    %4 = vector.shape_cast %3 : vector<128xf32> to vector<1x128xf32>
    %cst_4 = arith.constant 3.200000e+01 : f32
    %5 = vector.broadcast %cst_4 : f32 to vector<1x128xf32>
    %6 = arith.divf %4, %5 : vector<1x128xf32>
    %7 = vector.broadcast %6 : vector<1x128xf32> to vector<32x128xf32>
    %8 = arith.subf %2, %7 : vector<32x128xf32>
    %9 = arith.mulf %8, %8 : vector<32x128xf32>
    %cst_5 = arith.constant dense<0.000000e+00> : vector<128xf32>
    %10 = vector.multi_reduction <add>, %9, %cst_5 [0] : vector<32x128xf32> to vector<128xf32>
    %11 = vector.shape_cast %10 : vector<128xf32> to vector<1x128xf32>
    %cst_6 = arith.constant 3.200000e+01 : f32
    %12 = vector.broadcast %cst_6 : f32 to vector<1x128xf32>
    %13 = arith.divf %11, %12 : vector<1x128xf32>
    %cst_7 = arith.constant 9.99999974E-6 : f32
    %14 = vector.broadcast %cst_7 : f32 to vector<1x128xf32>
    %15 = arith.addf %13, %14 : vector<1x128xf32>
    %16 = math.rsqrt %15 : vector<1x128xf32>
    %c0_8 = arith.constant 0 : index
    %c0_9 = arith.constant 0 : index
    %17 = vector.load %arg3[%c0_8, %c0_9] : memref<1x128xf32, #tpu.memory_space<vmem>>, vector<1x128xf32>
    %18 = arith.mulf %17, %16 : vector<1x128xf32>
    %c0_10 = arith.constant 0 : index
    %c0_11 = arith.constant 0 : index
    %19 = vector.load %arg4[%c0_10, %c0_11] : memref<1x128xf32, #tpu.memory_space<vmem>>, vector<1x128xf32>
    %20 = arith.mulf %6, %18 : vector<1x128xf32>
    %21 = arith.subf %19, %20 : vector<1x128xf32>
    %22 = vector.broadcast %18 : vector<1x128xf32> to vector<32x128xf32>
    %23 = arith.mulf %2, %22 : vector<32x128xf32>
    %24 = vector.broadcast %21 : vector<1x128xf32> to vector<32x128xf32>
    %25 = arith.addf %23, %24 : vector<32x128xf32>
    %cst_12 = arith.constant 0.000000e+00 : f32
    %26 = vector.broadcast %cst_12 : f32 to vector<32x128xf32>
    %27 = arith.maximumf %25, %26 : vector<32x128xf32>
    %c0_13 = arith.constant 0 : index
    %c0_14 = arith.constant 0 : index
    %28 = vector.load %arg5[%c0_13, %c0_14] : memref<32x128xf32, #tpu.memory_space<vmem>>, vector<32x128xf32>
    tpu.vector_store %arg5[%c0_13, %c0_14], %27 {strides = array<i32>} : memref<32x128xf32, #tpu.memory_space<vmem>>, vector<32x128xf32>,
    return
  }
  func.func @transform_0(%arg0: i32) -> (i32, i32) {
    %c0_i32 = arith.constant 0 : i32
    %c0_i32_0 = arith.constant 0 : i32
    %c0_i32_1 = arith.constant 0 : i32
    return %c0_i32, %c0_i32_0 : i32, i32
  }
  func.func @transform_1(%arg0: i32) -> (i32, i32) {
    %c0_i32 = arith.constant 0 : i32
    %c0_i32_0 = arith.constant 0 : i32
    %c0_i32_1 = arith.constant 0 : i32
    return %c0_i32, %c0_i32_0 : i32, i32
  }
  func.func @transform_2(%arg0: i32) -> (i32, i32) {
    %c0_i32 = arith.constant 0 : i32
    %c0_i32_0 = arith.constant 0 : i32
    %c0_i32_1 = arith.constant 0 : i32
    return %c0_i32, %c0_i32_0 : i32, i32
  }
  func.func @transform_3(%arg0: i32) -> (i32, i32) {
    %c0_i32 = arith.constant 0 : i32
    %c0_i32_0 = arith.constant 0 : i32
    %c0_i32_1 = arith.constant 0 : i32
    return %c0_i32, %c0_i32_0 : i32, i32
  }
  func.func @transform_4(%arg0: i32) -> (i32, i32) {
    %c0_i32 = arith.constant 0 : i32
    %c0_i32_0 = arith.constant 0 : i32
    %c0_i32_1 = arith.constant 0 : i32
    return %c0_i32, %c0_i32_0 : i32, i32
  }
}

module attributes {stable_mosaic.version = 11 : i64} {
  func.func @gemm_bn_relu_kernel(%arg0: i32, %arg1: memref<24x256xf32, #tpu.memory_space<vmem>>, %arg2: memref<256x256xf32, #tpu.memory_space<vmem>>, %arg3: memref<1x64xf32, #tpu.memory_space<vmem>>, %arg4: memref<1x64xf32, #tpu.memory_space<vmem>>, %arg5: memref<24x256xf32, #tpu.memory_space<vmem>>) attributes {dimension_semantics = [#tpu.dimension_semantics<arbitrary>], iteration_bounds = array<i64: 1>, scalar_prefetch = 0 : i64, scratch_operands = 0 : i64, tpu.core_type = #tpu.core_type<tc>, window_params = [{pipeline_mode = #tpu.pipeline_mode<synchronous>, transform_indices = @transform_0, window_bounds = array<i64: 24, 256>}, {pipeline_mode = #tpu.pipeline_mode<synchronous>, transform_indices = @transform_1, window_bounds = array<i64: 256, 256>}, {pipeline_mode = #tpu.pipeline_mode<synchronous>, transform_indices = @transform_2, window_bounds = array<i64: 1, 64>}, {pipeline_mode = #tpu.pipeline_mode<synchronous>, transform_indices = @transform_3, window_bounds = array<i64: 1, 64>}, {pipeline_mode = #tpu.pipeline_mode<synchronous>, transform_indices = @transform_4, window_bounds = array<i64: 24, 256>}]} {
    %c0 = arith.constant 0 : index
    %c0_0 = arith.constant 0 : index
    %0 = vector.load %arg1[%c0, %c0_0] : memref<24x256xf32, #tpu.memory_space<vmem>>, vector<24x256xf32>
    %c0_1 = arith.constant 0 : index
    %c0_2 = arith.constant 0 : index
    %1 = vector.load %arg2[%c0_1, %c0_2] : memref<256x256xf32, #tpu.memory_space<vmem>>, vector<256x256xf32>
    %cst = arith.constant dense<0.000000e+00> : vector<24x256xf32>
    %2 = tpu.matmul %0, %1, %cst {dimension_numbers = #tpu.dot_dimension_numbers<[1], [0], [0], [1], [0, 0, 1, 1], [], []>} : vector<24x256xf32>, vector<256x256xf32>, vector<24x256xf32> -> vector<24x256xf32>
    %3 = vector.extract_strided_slice %2 {offsets = [0, 0], sizes = [18, 256], strides = [1, 1]} : vector<24x256xf32> to vector<18x256xf32>
    %4 = vector.extract_strided_slice %3 {offsets = [0, 0], sizes = [18, 64], strides = [1, 1]} : vector<18x256xf32> to vector<18x64xf32>
    %5 = vector.extract_strided_slice %3 {offsets = [0, 64], sizes = [18, 64], strides = [1, 1]} : vector<18x256xf32> to vector<18x64xf32>
    %6 = arith.addf %4, %5 : vector<18x64xf32>
    %7 = vector.extract_strided_slice %3 {offsets = [0, 128], sizes = [18, 64], strides = [1, 1]} : vector<18x256xf32> to vector<18x64xf32>
    %8 = arith.addf %6, %7 : vector<18x64xf32>
    %9 = vector.extract_strided_slice %3 {offsets = [0, 192], sizes = [18, 64], strides = [1, 1]} : vector<18x256xf32> to vector<18x64xf32>
    %10 = arith.addf %8, %9 : vector<18x64xf32>
    %cst_3 = arith.constant dense<0.000000e+00> : vector<64xf32>
    %11 = vector.multi_reduction <add>, %10, %cst_3 [0] : vector<18x64xf32> to vector<64xf32>
    %12 = vector.shape_cast %11 : vector<64xf32> to vector<1x64xf32>
    %cst_4 = arith.constant 7.200000e+01 : f32
    %13 = vector.broadcast %cst_4 : f32 to vector<1x64xf32>
    %14 = arith.divf %12, %13 : vector<1x64xf32>
    %15 = vector.extract_strided_slice %3 {offsets = [0, 0], sizes = [18, 64], strides = [1, 1]} : vector<18x256xf32> to vector<18x64xf32>
    %16 = vector.broadcast %14 : vector<1x64xf32> to vector<18x64xf32>
    %17 = arith.subf %15, %16 : vector<18x64xf32>
    %18 = arith.mulf %17, %17 : vector<18x64xf32>
    %cst_5 = arith.constant dense<0.000000e+00> : vector<64xf32>
    %19 = vector.multi_reduction <add>, %18, %cst_5 [0] : vector<18x64xf32> to vector<64xf32>
    %20 = vector.shape_cast %19 : vector<64xf32> to vector<1x64xf32>
    %21 = vector.extract_strided_slice %3 {offsets = [0, 64], sizes = [18, 64], strides = [1, 1]} : vector<18x256xf32> to vector<18x64xf32>
    %22 = vector.broadcast %14 : vector<1x64xf32> to vector<18x64xf32>
    %23 = arith.subf %21, %22 : vector<18x64xf32>
    %24 = arith.mulf %23, %23 : vector<18x64xf32>
    %cst_6 = arith.constant dense<0.000000e+00> : vector<64xf32>
    %25 = vector.multi_reduction <add>, %24, %cst_6 [0] : vector<18x64xf32> to vector<64xf32>
    %26 = vector.shape_cast %25 : vector<64xf32> to vector<1x64xf32>
    %27 = arith.addf %20, %26 : vector<1x64xf32>
    %28 = vector.extract_strided_slice %3 {offsets = [0, 128], sizes = [18, 64], strides = [1, 1]} : vector<18x256xf32> to vector<18x64xf32>
    %29 = vector.broadcast %14 : vector<1x64xf32> to vector<18x64xf32>
    %30 = arith.subf %28, %29 : vector<18x64xf32>
    %31 = arith.mulf %30, %30 : vector<18x64xf32>
    %cst_7 = arith.constant dense<0.000000e+00> : vector<64xf32>
    %32 = vector.multi_reduction <add>, %31, %cst_7 [0] : vector<18x64xf32> to vector<64xf32>
    %33 = vector.shape_cast %32 : vector<64xf32> to vector<1x64xf32>
    %34 = arith.addf %27, %33 : vector<1x64xf32>
    %35 = vector.extract_strided_slice %3 {offsets = [0, 192], sizes = [18, 64], strides = [1, 1]} : vector<18x256xf32> to vector<18x64xf32>
    %36 = vector.broadcast %14 : vector<1x64xf32> to vector<18x64xf32>
    %37 = arith.subf %35, %36 : vector<18x64xf32>
    %38 = arith.mulf %37, %37 : vector<18x64xf32>
    %cst_8 = arith.constant dense<0.000000e+00> : vector<64xf32>
    %39 = vector.multi_reduction <add>, %38, %cst_8 [0] : vector<18x64xf32> to vector<64xf32>
    %40 = vector.shape_cast %39 : vector<64xf32> to vector<1x64xf32>
    %41 = arith.addf %34, %40 : vector<1x64xf32>
    %cst_9 = arith.constant 7.200000e+01 : f32
    %42 = vector.broadcast %cst_9 : f32 to vector<1x64xf32>
    %43 = arith.divf %41, %42 : vector<1x64xf32>
    %cst_10 = arith.constant 9.99999974E-6 : f32
    %44 = vector.broadcast %cst_10 : f32 to vector<1x64xf32>
    %45 = arith.addf %43, %44 : vector<1x64xf32>
    %46 = math.rsqrt %45 : vector<1x64xf32>
    %c0_11 = arith.constant 0 : index
    %c0_12 = arith.constant 0 : index
    %47 = vector.load %arg3[%c0_11, %c0_12] : memref<1x64xf32, #tpu.memory_space<vmem>>, vector<1x64xf32>
    %48 = arith.mulf %47, %46 : vector<1x64xf32>
    %c0_13 = arith.constant 0 : index
    %c0_14 = arith.constant 0 : index
    %49 = vector.load %arg4[%c0_13, %c0_14] : memref<1x64xf32, #tpu.memory_space<vmem>>, vector<1x64xf32>
    %50 = arith.mulf %14, %48 : vector<1x64xf32>
    %51 = arith.subf %49, %50 : vector<1x64xf32>
    %52 = tpu.concatenate %48, %48, %48, %48 in 1 : vector<1x64xf32>, vector<1x64xf32>, vector<1x64xf32>, vector<1x64xf32> -> vector<1x256xf32>
    %53 = tpu.concatenate %51, %51, %51, %51 in 1 : vector<1x64xf32>, vector<1x64xf32>, vector<1x64xf32>, vector<1x64xf32> -> vector<1x256xf32>
    %54 = vector.broadcast %52 : vector<1x256xf32> to vector<24x256xf32>
    %55 = arith.mulf %2, %54 : vector<24x256xf32>
    %56 = vector.broadcast %53 : vector<1x256xf32> to vector<24x256xf32>
    %57 = arith.addf %55, %56 : vector<24x256xf32>
    %cst_15 = arith.constant 0.000000e+00 : f32
    %58 = vector.broadcast %cst_15 : f32 to vector<24x256xf32>
    %59 = arith.maximumf %57, %58 : vector<24x256xf32>
    %c0_16 = arith.constant 0 : index
    %c0_17 = arith.constant 0 : index
    %60 = vector.load %arg5[%c0_16, %c0_17] : memref<24x256xf32, #tpu.memory_space<vmem>>, vector<24x256xf32>
    tpu.vector_store %arg5[%c0_16, %c0_17], %59 {strides = array<i32>} : memref<24x256xf32, #tpu.memory_space<vmem>>, vector<24x256xf32>,
    return
  }
  func.func @transform_0(%arg0: i32) -> (i32, i32) {
    %c0_i32 = arith.constant 0 : i32
    %c0_i32_0 = arith.constant 0 : i32
    %c0_i32_1 = arith.constant 0 : i32
    return %c0_i32, %c0_i32_0 : i32, i32
  }
  func.func @transform_1(%arg0: i32) -> (i32, i32) {
    %c0_i32 = arith.constant 0 : i32
    %c0_i32_0 = arith.constant 0 : i32
    %c0_i32_1 = arith.constant 0 : i32
    return %c0_i32, %c0_i32_0 : i32, i32
  }
  func.func @transform_2(%arg0: i32) -> (i32, i32) {
    %c0_i32 = arith.constant 0 : i32
    %c0_i32_0 = arith.constant 0 : i32
    %c0_i32_1 = arith.constant 0 : i32
    return %c0_i32, %c0_i32_0 : i32, i32
  }
  func.func @transform_3(%arg0: i32) -> (i32, i32) {
    %c0_i32 = arith.constant 0 : i32
    %c0_i32_0 = arith.constant 0 : i32
    %c0_i32_1 = arith.constant 0 : i32
    return %c0_i32, %c0_i32_0 : i32, i32
  }
  func.func @transform_4(%arg0: i32) -> (i32, i32) {
    %c0_i32 = arith.constant 0 : i32
    %c0_i32_0 = arith.constant 0 : i32
    %c0_i32_1 = arith.constant 0 : i32
    return %c0_i32, %c0_i32_0 : i32, i32
  }
}

module attributes {stable_mosaic.version = 11 : i64} {
  func.func @gemm_bn_relu_kernel(%arg0: i32, %arg1: memref<104x256xf32, #tpu.memory_space<vmem>>, %arg2: memref<256x128xf32, #tpu.memory_space<vmem>>, %arg3: memref<1x32xf32, #tpu.memory_space<vmem>>, %arg4: memref<1x32xf32, #tpu.memory_space<vmem>>, %arg5: memref<104x128xf32, #tpu.memory_space<vmem>>) attributes {dimension_semantics = [#tpu.dimension_semantics<arbitrary>], iteration_bounds = array<i64: 1>, scalar_prefetch = 0 : i64, scratch_operands = 0 : i64, tpu.core_type = #tpu.core_type<tc>, window_params = [{pipeline_mode = #tpu.pipeline_mode<synchronous>, transform_indices = @transform_0, window_bounds = array<i64: 104, 256>}, {pipeline_mode = #tpu.pipeline_mode<synchronous>, transform_indices = @transform_1, window_bounds = array<i64: 256, 128>}, {pipeline_mode = #tpu.pipeline_mode<synchronous>, transform_indices = @transform_2, window_bounds = array<i64: 1, 32>}, {pipeline_mode = #tpu.pipeline_mode<synchronous>, transform_indices = @transform_3, window_bounds = array<i64: 1, 32>}, {pipeline_mode = #tpu.pipeline_mode<synchronous>, transform_indices = @transform_4, window_bounds = array<i64: 104, 128>}]} {
    %c0 = arith.constant 0 : index
    %c0_0 = arith.constant 0 : index
    %0 = vector.load %arg1[%c0, %c0_0] : memref<104x256xf32, #tpu.memory_space<vmem>>, vector<104x256xf32>
    %c0_1 = arith.constant 0 : index
    %c0_2 = arith.constant 0 : index
    %1 = vector.load %arg2[%c0_1, %c0_2] : memref<256x128xf32, #tpu.memory_space<vmem>>, vector<256x128xf32>
    %cst = arith.constant dense<0.000000e+00> : vector<104x128xf32>
    %2 = tpu.matmul %0, %1, %cst {dimension_numbers = #tpu.dot_dimension_numbers<[1], [0], [0], [1], [0, 0, 1, 1], [], []>} : vector<104x256xf32>, vector<256x128xf32>, vector<104x128xf32> -> vector<104x128xf32>
    %3 = vector.extract_strided_slice %2 {offsets = [0, 0], sizes = [98, 128], strides = [1, 1]} : vector<104x128xf32> to vector<98x128xf32>
    %4 = vector.extract_strided_slice %3 {offsets = [0, 0], sizes = [98, 32], strides = [1, 1]} : vector<98x128xf32> to vector<98x32xf32>
    %5 = vector.extract_strided_slice %3 {offsets = [0, 32], sizes = [98, 32], strides = [1, 1]} : vector<98x128xf32> to vector<98x32xf32>
    %6 = arith.addf %4, %5 : vector<98x32xf32>
    %7 = vector.extract_strided_slice %3 {offsets = [0, 64], sizes = [98, 32], strides = [1, 1]} : vector<98x128xf32> to vector<98x32xf32>
    %8 = arith.addf %6, %7 : vector<98x32xf32>
    %9 = vector.extract_strided_slice %3 {offsets = [0, 96], sizes = [98, 32], strides = [1, 1]} : vector<98x128xf32> to vector<98x32xf32>
    %10 = arith.addf %8, %9 : vector<98x32xf32>
    %cst_3 = arith.constant dense<0.000000e+00> : vector<32xf32>
    %11 = vector.multi_reduction <add>, %10, %cst_3 [0] : vector<98x32xf32> to vector<32xf32>
    %12 = vector.shape_cast %11 : vector<32xf32> to vector<1x32xf32>
    %cst_4 = arith.constant 3.920000e+02 : f32
    %13 = vector.broadcast %cst_4 : f32 to vector<1x32xf32>
    %14 = arith.divf %12, %13 : vector<1x32xf32>
    %15 = vector.extract_strided_slice %3 {offsets = [0, 0], sizes = [98, 32], strides = [1, 1]} : vector<98x128xf32> to vector<98x32xf32>
    %16 = vector.broadcast %14 : vector<1x32xf32> to vector<98x32xf32>
    %17 = arith.subf %15, %16 : vector<98x32xf32>
    %18 = arith.mulf %17, %17 : vector<98x32xf32>
    %cst_5 = arith.constant dense<0.000000e+00> : vector<32xf32>
    %19 = vector.multi_reduction <add>, %18, %cst_5 [0] : vector<98x32xf32> to vector<32xf32>
    %20 = vector.shape_cast %19 : vector<32xf32> to vector<1x32xf32>
    %21 = vector.extract_strided_slice %3 {offsets = [0, 32], sizes = [98, 32], strides = [1, 1]} : vector<98x128xf32> to vector<98x32xf32>
    %22 = vector.broadcast %14 : vector<1x32xf32> to vector<98x32xf32>
    %23 = arith.subf %21, %22 : vector<98x32xf32>
    %24 = arith.mulf %23, %23 : vector<98x32xf32>
    %cst_6 = arith.constant dense<0.000000e+00> : vector<32xf32>
    %25 = vector.multi_reduction <add>, %24, %cst_6 [0] : vector<98x32xf32> to vector<32xf32>
    %26 = vector.shape_cast %25 : vector<32xf32> to vector<1x32xf32>
    %27 = arith.addf %20, %26 : vector<1x32xf32>
    %28 = vector.extract_strided_slice %3 {offsets = [0, 64], sizes = [98, 32], strides = [1, 1]} : vector<98x128xf32> to vector<98x32xf32>
    %29 = vector.broadcast %14 : vector<1x32xf32> to vector<98x32xf32>
    %30 = arith.subf %28, %29 : vector<98x32xf32>
    %31 = arith.mulf %30, %30 : vector<98x32xf32>
    %cst_7 = arith.constant dense<0.000000e+00> : vector<32xf32>
    %32 = vector.multi_reduction <add>, %31, %cst_7 [0] : vector<98x32xf32> to vector<32xf32>
    %33 = vector.shape_cast %32 : vector<32xf32> to vector<1x32xf32>
    %34 = arith.addf %27, %33 : vector<1x32xf32>
    %35 = vector.extract_strided_slice %3 {offsets = [0, 96], sizes = [98, 32], strides = [1, 1]} : vector<98x128xf32> to vector<98x32xf32>
    %36 = vector.broadcast %14 : vector<1x32xf32> to vector<98x32xf32>
    %37 = arith.subf %35, %36 : vector<98x32xf32>
    %38 = arith.mulf %37, %37 : vector<98x32xf32>
    %cst_8 = arith.constant dense<0.000000e+00> : vector<32xf32>
    %39 = vector.multi_reduction <add>, %38, %cst_8 [0] : vector<98x32xf32> to vector<32xf32>
    %40 = vector.shape_cast %39 : vector<32xf32> to vector<1x32xf32>
    %41 = arith.addf %34, %40 : vector<1x32xf32>
    %cst_9 = arith.constant 3.920000e+02 : f32
    %42 = vector.broadcast %cst_9 : f32 to vector<1x32xf32>
    %43 = arith.divf %41, %42 : vector<1x32xf32>
    %cst_10 = arith.constant 9.99999974E-6 : f32
    %44 = vector.broadcast %cst_10 : f32 to vector<1x32xf32>
    %45 = arith.addf %43, %44 : vector<1x32xf32>
    %46 = math.rsqrt %45 : vector<1x32xf32>
    %c0_11 = arith.constant 0 : index
    %c0_12 = arith.constant 0 : index
    %47 = vector.load %arg3[%c0_11, %c0_12] : memref<1x32xf32, #tpu.memory_space<vmem>>, vector<1x32xf32>
    %48 = arith.mulf %47, %46 : vector<1x32xf32>
    %c0_13 = arith.constant 0 : index
    %c0_14 = arith.constant 0 : index
    %49 = vector.load %arg4[%c0_13, %c0_14] : memref<1x32xf32, #tpu.memory_space<vmem>>, vector<1x32xf32>
    %50 = arith.mulf %14, %48 : vector<1x32xf32>
    %51 = arith.subf %49, %50 : vector<1x32xf32>
    %52 = tpu.concatenate %48, %48, %48, %48 in 1 : vector<1x32xf32>, vector<1x32xf32>, vector<1x32xf32>, vector<1x32xf32> -> vector<1x128xf32>
    %53 = tpu.concatenate %51, %51, %51, %51 in 1 : vector<1x32xf32>, vector<1x32xf32>, vector<1x32xf32>, vector<1x32xf32> -> vector<1x128xf32>
    %54 = vector.broadcast %52 : vector<1x128xf32> to vector<104x128xf32>
    %55 = arith.mulf %2, %54 : vector<104x128xf32>
    %56 = vector.broadcast %53 : vector<1x128xf32> to vector<104x128xf32>
    %57 = arith.addf %55, %56 : vector<104x128xf32>
    %cst_15 = arith.constant 0.000000e+00 : f32
    %58 = vector.broadcast %cst_15 : f32 to vector<104x128xf32>
    %59 = arith.maximumf %57, %58 : vector<104x128xf32>
    %c0_16 = arith.constant 0 : index
    %c0_17 = arith.constant 0 : index
    %60 = vector.load %arg5[%c0_16, %c0_17] : memref<104x128xf32, #tpu.memory_space<vmem>>, vector<104x128xf32>
    tpu.vector_store %arg5[%c0_16, %c0_17], %59 {strides = array<i32>} : memref<104x128xf32, #tpu.memory_space<vmem>>, vector<104x128xf32>,
    return
  }
  func.func @transform_0(%arg0: i32) -> (i32, i32) {
    %c0_i32 = arith.constant 0 : i32
    %c0_i32_0 = arith.constant 0 : i32
    %c0_i32_1 = arith.constant 0 : i32
    return %c0_i32, %c0_i32_0 : i32, i32
  }
  func.func @transform_1(%arg0: i32) -> (i32, i32) {
    %c0_i32 = arith.constant 0 : i32
    %c0_i32_0 = arith.constant 0 : i32
    %c0_i32_1 = arith.constant 0 : i32
    return %c0_i32, %c0_i32_0 : i32, i32
  }
  func.func @transform_2(%arg0: i32) -> (i32, i32) {
    %c0_i32 = arith.constant 0 : i32
    %c0_i32_0 = arith.constant 0 : i32
    %c0_i32_1 = arith.constant 0 : i32
    return %c0_i32, %c0_i32_0 : i32, i32
  }
  func.func @transform_3(%arg0: i32) -> (i32, i32) {
    %c0_i32 = arith.constant 0 : i32
    %c0_i32_0 = arith.constant 0 : i32
    %c0_i32_1 = arith.constant 0 : i32
    return %c0_i32, %c0_i32_0 : i32, i32
  }
  func.func @transform_4(%arg0: i32) -> (i32, i32) {
    %c0_i32 = arith.constant 0 : i32
    %c0_i32_0 = arith.constant 0 : i32
    %c0_i32_1 = arith.constant 0 : i32
    return %c0_i32, %c0_i32_0 : i32, i32
  }
}

module attributes {stable_mosaic.version = 11 : i64} {
  func.func @gemm_bias_sigmoid_kernel(%arg0: i32, %arg1: memref<200x384xf32, #tpu.memory_space<vmem>>, %arg2: memref<384x128xf32, #tpu.memory_space<vmem>>, %arg3: memref<1x128xf32, #tpu.memory_space<vmem>>, %arg4: memref<200x128xf32, #tpu.memory_space<vmem>>) attributes {dimension_semantics = [#tpu.dimension_semantics<parallel>], iteration_bounds = array<i64: 2>, scalar_prefetch = 0 : i64, scratch_operands = 0 : i64, tpu.core_type = #tpu.core_type<tc>, window_params = [{transform_indices = @transform_0, window_bounds = array<i64: 200, 384>}, {pipeline_mode = #tpu.pipeline_mode<synchronous>, transform_indices = @transform_1, window_bounds = array<i64: 384, 128>}, {pipeline_mode = #tpu.pipeline_mode<synchronous>, transform_indices = @transform_2, window_bounds = array<i64: 1, 128>}, {transform_indices = @transform_3, window_bounds = array<i64: 200, 128>}]} {
    %c0 = arith.constant 0 : index
    %c0_0 = arith.constant 0 : index
    %0 = vector.load %arg1[%c0, %c0_0] : memref<200x384xf32, #tpu.memory_space<vmem>>, vector<200x384xf32>
    %c0_1 = arith.constant 0 : index
    %c0_2 = arith.constant 0 : index
    %1 = vector.load %arg2[%c0_1, %c0_2] : memref<384x128xf32, #tpu.memory_space<vmem>>, vector<384x128xf32>
    %cst = arith.constant dense<0.000000e+00> : vector<200x128xf32>
    %2 = tpu.matmul %0, %1, %cst {dimension_numbers = #tpu.dot_dimension_numbers<[1], [0], [0], [1], [0, 0, 1, 1], [], []>} : vector<200x384xf32>, vector<384x128xf32>, vector<200x128xf32> -> vector<200x128xf32>
    %c0_3 = arith.constant 0 : index
    %c0_4 = arith.constant 0 : index
    %3 = vector.load %arg3[%c0_3, %c0_4] : memref<1x128xf32, #tpu.memory_space<vmem>>, vector<1x128xf32>
    %4 = vector.broadcast %3 : vector<1x128xf32> to vector<200x128xf32>
    %5 = arith.addf %2, %4 : vector<200x128xf32>
    %6 = arith.negf %5 : vector<200x128xf32>
    %7 = math.exp %6 : vector<200x128xf32>
    %cst_5 = arith.constant 1.000000e+00 : f32
    %8 = vector.broadcast %cst_5 : f32 to vector<200x128xf32>
    %9 = arith.addf %8, %7 : vector<200x128xf32>
    %10 = arith.divf %8, %9 : vector<200x128xf32>
    %c0_6 = arith.constant 0 : index
    %c0_7 = arith.constant 0 : index
    %11 = vector.load %arg4[%c0_6, %c0_7] : memref<200x128xf32, #tpu.memory_space<vmem>>, vector<200x128xf32>
    tpu.vector_store %arg4[%c0_6, %c0_7], %10 {strides = array<i32>} : memref<200x128xf32, #tpu.memory_space<vmem>>, vector<200x128xf32>,
    return
  }
  func.func @transform_0(%arg0: i32) -> (i32, i32) {
    %c0_i32 = arith.constant 0 : i32
    %c0_i32_0 = arith.constant 0 : i32
    return %arg0, %c0_i32 : i32, i32
  }
  func.func @transform_1(%arg0: i32) -> (i32, i32) {
    %c0_i32 = arith.constant 0 : i32
    %c0_i32_0 = arith.constant 0 : i32
    %c0_i32_1 = arith.constant 0 : i32
    return %c0_i32, %c0_i32_0 : i32, i32
  }
  func.func @transform_2(%arg0: i32) -> (i32, i32) {
    %c0_i32 = arith.constant 0 : i32
    %c0_i32_0 = arith.constant 0 : i32
    %c0_i32_1 = arith.constant 0 : i32
    return %c0_i32, %c0_i32_0 : i32, i32
  }
  func.func @transform_3(%arg0: i32) -> (i32, i32) {
    %c0_i32 = arith.constant 0 : i32
    %c0_i32_0 = arith.constant 0 : i32
    return %arg0, %c0_i32 : i32, i32
  }
}

</mosaic_0001>

<llo_original>
// kernel: decoder_forward.4
$region0: #{decoder_forward.4}
  #allocation0 [shape = 'u32[]', space=smem, size = 0x4, offset = 0x4, fixed_abs, tag = 'smem constant byte address 0x4 - core index']
  #allocation1 [shape = 'u32[144,128]{1,0:T(1,128)}', space=vmem, size = 0x12000, scoped, tag = 'internal scratch']
  %s0 = inlined_call_operand.vmem [shape: f32[32,128], index: 0, kind: input, shape index: {}]
  %s1 = inlined_call_operand.hbm [shape: f32[128,128], index: 1, kind: input, shape index: {}]
  %s2 = inlined_call_operand.hbm [shape: f32[1,128], index: 2, kind: input, shape index: {}]
  %s3 = inlined_call_operand.hbm [shape: f32[1,128], index: 3, kind: input, shape index: {}]
  %s4 = inlined_call_operand.vmem [shape: f32[32,128], index: 4, kind: output, shape index: {}]
  %s5 = sld [smem:[#allocation0]]
  $region38: #{decoder_forward.4} parent=0
    _
  %s7 = ssub.s32 1, %s5
  %s8 = scalar_select 0, %s7, %s5
  $region1: #{decoder_forward.4} parent=0
    #allocation2 [shape = 'u8[65536]{0}', space=vmem, size = 0x10000, scoped, tag = 'input window, operand 1, single buffered']
    #allocation3 [shape = 's32[1]{0}', space=sflag, size = 0x4, scoped, tag = 'scoped memory for decoder_forward.4']
    #allocation4 [shape = 'u8[512]{0}', space=vmem, size = 0x400, scoped, tag = 'input window, operand 2, single buffered']
    #allocation5 [shape = 's32[1]{0}', space=sflag, size = 0x4, scoped, tag = 'scoped memory for decoder_forward.4']
    #allocation6 [shape = 'u8[512]{0}', space=vmem, size = 0x400, scoped, tag = 'input window, operand 3, single buffered']
    %9 = vsyncpa [#allocation3], 0
    %10 = vsyncpa [#allocation5], 0
    // Predicated region
    $region2: #{decoder_forward.4} parent=1 // pred_check
      _
    $region3: #{decoder_forward.4} parent=1 // pred_check_branch
      %12 = sbr.rel (0) target = $region5
    $region4: #{decoder_forward.4} parent=1 // pred_region
      _
    $region5: #{decoder_forward.4} parent=1 // pred_fallthru
      _
    // Predicated region
    $region6: #{decoder_forward.4} parent=1 // pred_check
      _
    $region7: #{decoder_forward.4} parent=1 // pred_check_branch
      %14 = sbr.rel (0) target = $region9
    $region8: #{decoder_forward.4} parent=1 // pred_region
      %s16 = ssub.s32 2048, 2048
      %17 = vsyncadd [#allocation3], %s16
      %s18 = sshll.u32 [#allocation2], 4
      %s19 = int_to_ptr.vmem [resolvable:$true] %s18
      %24 = dma.hbm_to_vmem [thread:$0]  %s1, 2048, %s19, [#allocation3], 128, 128, 8
    $region9: #{decoder_forward.4} parent=1 // pred_fallthru
      _
    // Predicated region
    $region10: #{decoder_forward.4} parent=1 // pred_check
      _
    $region11: #{decoder_forward.4} parent=1 // pred_check_branch
      %26 = sbr.rel (0) target = $region13
    $region12: #{decoder_forward.4} parent=1 // pred_region
      %s28 = ssub.s32 16, 16
      %29 = vsyncadd [#allocation5], %s28
      %s31 = sshll.u32 [#allocation4], 4
      %s32 = int_to_ptr.vmem [resolvable:$true] %s31
      %34 = dma.hbm_to_vmem [thread:$0]  %s2, 16, %s32, [#allocation5]
    $region13: #{decoder_forward.4} parent=1 // pred_fallthru
      _
    // Predicated region
    $region14: #{decoder_forward.4} parent=1 // pred_check
      _
    $region15: #{decoder_forward.4} parent=1 // pred_check_branch
      %36 = sbr.rel (0) target = $region17
    $region16: #{decoder_forward.4} parent=1 // pred_region
      %s38 = ssub.s32 16, 16
      %39 = vsyncadd [#allocation5], %s38
      %s41 = sshll.u32 [#allocation6], 4
      %s42 = int_to_ptr.vmem [resolvable:$true] %s41
      %44 = dma.hbm_to_vmem [thread:$0]  %s3, 16, %s42, [#allocation5]
    $region17: #{decoder_forward.4} parent=1 // pred_fallthru
      _
    // Predicated region
    $region18: #{decoder_forward.4} parent=1 // pred_check
      _
    $region19: #{decoder_forward.4} parent=1 // pred_check_branch
      %46 = sbr.rel (0) target = $region21
    $region20: #{decoder_forward.4} parent=1 // pred_region
      %47 = dma.done [#allocation3], 2048
    $region21: #{decoder_forward.4} parent=1 // pred_fallthru
      _
    // Predicated region
    $region22: #{decoder_forward.4} parent=1 // pred_check
      _
    $region23: #{decoder_forward.4} parent=1 // pred_check_branch
      %49 = sbr.rel (0) target = $region25
    $region24: #{decoder_forward.4} parent=1 // pred_region
      %50 = dma.done [#allocation5], 16
    $region25: #{decoder_forward.4} parent=1 // pred_fallthru
      _
    // Predicated region
    $region26: #{decoder_forward.4} parent=1 // pred_check
      _
    $region27: #{decoder_forward.4} parent=1 // pred_check_branch
      %52 = sbr.rel (0) target = $region29
    $region28: #{decoder_forward.4} parent=1 // pred_region
      %53 = dma.done [#allocation5], 16
    $region29: #{decoder_forward.4} parent=1 // pred_fallthru
      _
    %v54 = vld [vmem:[%s0] sm:$0xff]
    %v55 = vld [vmem:[%s0 + $0x8] sm:$0xff]
    %v56 = vld [vmem:[%s0 + $0x10] sm:$0xff]
    %v57 = vld [vmem:[%s0 + $0x18] sm:$0xff]
    %v58 = vld [vmem:[#allocation2] sm:$0xff]
    %v59 = vld [vmem:[#allocation2 + $0x8] sm:$0xff]
    %v60 = vld [vmem:[#allocation2 + $0x10] sm:$0xff]
    %v61 = vld [vmem:[#allocation2 + $0x18] sm:$0xff]
    %v62 = vld [vmem:[#allocation2 + $0x20] sm:$0xff]
    %v63 = vld [vmem:[#allocation2 + $0x28] sm:$0xff]
    %v64 = vld [vmem:[#allocation2 + $0x30] sm:$0xff]
    %v65 = vld [vmem:[#allocation2 + $0x38] sm:$0xff]
    %v66 = vld [vmem:[#allocation2 + $0x40] sm:$0xff]
    %v67 = vld [vmem:[#allocation2 + $0x48] sm:$0xff]
    %v68 = vld [vmem:[#allocation2 + $0x50] sm:$0xff]
    %v69 = vld [vmem:[#allocation2 + $0x58] sm:$0xff]
    %v70 = vld [vmem:[#allocation2 + $0x60] sm:$0xff]
    %v71 = vld [vmem:[#allocation2 + $0x68] sm:$0xff]
    %v72 = vld [vmem:[#allocation2 + $0x70] sm:$0xff]
    %v73 = vld [vmem:[#allocation2 + $0x78] sm:$0xff]
    %74 = vmatprep.subr.mxu0 0.0
    %75 = vmatpush1.msra.mxu0 %v58
    %76 = vmatprep.subr.mxu0 0.0
    %77 = vmatpush1.msra.mxu0 %v59
    %78 = vmatprep.subr.mxu0 0.0
    %79 = vmatpush1.msra.mxu0 %v60
    %80 = vmatprep.subr.mxu0 0.0
    %81 = vmatpush1.msra.mxu0 %v61
    %82 = vmatprep.subr.mxu0 0.0
    %83 = vmatpush1.msra.mxu0 %v62
    %84 = vmatprep.subr.mxu0 0.0
    %85 = vmatpush1.msra.mxu0 %v63
    %86 = vmatprep.subr.mxu0 0.0
    %87 = vmatpush1.msra.mxu0 %v64
    %88 = vmatprep.subr.mxu0 0.0
    %89 = vmatpush1.msra.mxu0 %v65
    %90 = vmatprep.subr.mxu0 0.0
    %91 = vmatpush1.msra.mxu0 %v66
    %92 = vmatprep.subr.mxu0 0.0
    %93 = vmatpush1.msra.mxu0 %v67
    %94 = vmatprep.subr.mxu0 0.0
    %95 = vmatpush1.msra.mxu0 %v68
    %96 = vmatprep.subr.mxu0 0.0
    %97 = vmatpush1.msra.mxu0 %v69
    %98 = vmatprep.subr.mxu0 0.0
    %99 = vmatpush1.msra.mxu0 %v70
    %100 = vmatprep.subr.mxu0 0.0
    %101 = vmatpush1.msra.mxu0 %v71
    %102 = vmatprep.subr.mxu0 0.0
    %103 = vmatpush1.msra.mxu0 %v72
    %104 = vmatprep.subr.mxu0 0.0
    %105 = vmatpush1.msra.mxu0 %v73
    %106 = vmatprep.subr.mxu0 0.0
    %107 = vmatpush1.msra.mxu0 0.0
    %108 = vmatprep.subr.mxu0 0.0
    %109 = vmatpush1.msra.mxu0 0.0
    %110 = vmatprep.subr.mxu0 0.0
    %111 = vmatpush1.msra.mxu0 0.0
    %112 = vmatprep.subr.mxu0 0.0
    %113 = vmatpush1.msra.mxu0 0.0
    %114 = vmatprep.subr.mxu0 0.0
    %115 = vmatpush1.msra.mxu0 0.0
    %116 = vmatprep.subr.mxu0 0.0
    %117 = vmatpush1.msra.mxu0 0.0
    %118 = vmatprep.subr.mxu0 0.0
    %119 = vmatpush1.msra.mxu0 0.0
    %120 = vmatprep.subr.mxu0 0.0
    %121 = vmatpush1.msra.mxu0 0.0
    %122 = vmatprep.subr.mxu0 0.0
    %123 = vmatpush1.msra.mxu0 0.0
    %124 = vmatprep.subr.mxu0 0.0
    %125 = vmatpush1.msra.mxu0 0.0
    %126 = vmatprep.subr.mxu0 0.0
    %127 = vmatpush1.msra.mxu0 0.0
    %128 = vmatprep.subr.mxu0 0.0
    %129 = vmatpush1.msra.mxu0 0.0
    %130 = vmatprep.subr.mxu0 0.0
    %131 = vmatpush1.msra.mxu0 0.0
    %132 = vmatprep.subr.mxu0 0.0
    %133 = vmatpush1.msra.mxu0 0.0
    %134 = vmatprep.subr.mxu0 0.0
    %135 = vmatpush1.msra.mxu0 0.0
    %136 = vmatprep.subr.mxu0 0.0
    %137 = vmatpush1.msra.mxu0 0.0
    %138 = vmatprep.mubr.f32.mxu0 0.0
    %139 = vmatmul.mubr.f32.gmra.mrb[0].mxu0 %v54
    %v140 = vpop.f32.mrb[0].mxu0
    %v141 = vadd.f32 0.0, %v140
    %v142 = vpop.f32.mrb[0].mxu0
    %143 = vmatprep.mubr.f32.mxu0 0.0
    %144 = vmatmul.mubr.f32.gmra.mrb[0].mxu0 %v55
    %v145 = vpop.f32.mrb[0].mxu0
    %v146 = vadd.f32 0.0, %v145
    %v147 = vpop.f32.mrb[0].mxu0
    %148 = vmatprep.mubr.f32.mxu0 0.0
    %149 = vmatmul.mubr.f32.gmra.mrb[0].mxu0 %v56
    %v150 = vpop.f32.mrb[0].mxu0
    %v151 = vadd.f32 0.0, %v150
    %v152 = vpop.f32.mrb[0].mxu0
    %153 = vmatprep.mubr.f32.mxu0 0.0
    %154 = vmatmul.mubr.f32.gmra.mrb[0].mxu0 %v57
    %v155 = vpop.f32.mrb[0].mxu0
    %v156 = vadd.f32 0.0, %v155
    %v157 = vpop.f32.mrb[0].mxu0
    %158 = vdwg.mxu0
    %v159 = vadd.f32 %v141, %v146
    %v160 = vadd.f32 %v159, %v151
    %v161 = vadd.f32 %v160, %v156
    %v162 = vrot.slane %v161, 4
    %v163 = vadd.f32 %v161, %v162
    %v164 = vrot.slane %v163, 2
    %v165 = vadd.f32 %v163, %v164
    %v166 = vrot.slane %v165, 1
    %v167 = vadd.f32 %v165, %v166
    %v168 = vrcp.pop 32.0
    %v169 = vmul.f32 %v167, %v168
    %v170 = vsub.f32 %v141, %v169
    %v171 = vsub.f32 %v146, %v169
    %v172 = vsub.f32 %v151, %v169
    %v173 = vsub.f32 %v156, %v169
    %v174 = vmul.f32 %v170, %v170
    %v175 = vmul.f32 %v171, %v171
    %v176 = vmul.f32 %v172, %v172
    %v177 = vmul.f32 %v173, %v173
    %v178 = vadd.f32 %v174, %v175
    %v179 = vadd.f32 %v178, %v176
    %v180 = vadd.f32 %v179, %v177
    %v181 = vrot.slane %v180, 4
    %v182 = vadd.f32 %v180, %v181
    %v183 = vrot.slane %v182, 2
    %v184 = vadd.f32 %v182, %v183
    %v185 = vrot.slane %v184, 1
    %v186 = vadd.f32 %v184, %v185
    %v187 = vmul.f32 %v186, %v168
    %v188 = vadd.f32 %v187, 1e-05
    %v189 = vrsqrt.pop %v188
    %v190 = vld [vmem:[#allocation4] sm:$0x1]
    %v191 = vmul.f32 %v190, %v189
    %v192 = vld [vmem:[#allocation6] sm:$0x1]
    %v193 = vmul.f32 %v169, %v191
    %v194 = vsub.f32 %v192, %v193
    %v196 = vlaneseq
    %v197 = vshrl.u32 %v196, 7
    %v198 = vsub.s32 0, %v197
    %v199 = vrot.slane %v191, %v198
    %v201 = vmul.f32 %v141, %v199
    %v202 = vmul.f32 %v146, %v199
    %v203 = vmul.f32 %v151, %v199
    %v204 = vmul.f32 %v156, %v199
    %v206 = vlaneseq
    %v207 = vshrl.u32 %v206, 7
    %v208 = vsub.s32 0, %v207
    %v209 = vrot.slane %v194, %v208
    %v211 = vadd.f32 %v201, %v209
    %v212 = vadd.f32 %v202, %v209
    %v213 = vadd.f32 %v203, %v209
    %v214 = vadd.f32 %v204, %v209
    %v215 = vmax.f32 %v211, 0.0
    %v216 = vmax.f32 %v212, 0.0
    %v217 = vmax.f32 %v213, 0.0
    %v218 = vmax.f32 %v214, 0.0
    %219 = vst [vmem:[%s4] sm:$0xff] %v215
    %220 = vst [vmem:[%s4 + $0x8] sm:$0xff] %v216
    %221 = vst [vmem:[%s4 + $0x10] sm:$0xff] %v217
    %222 = vst [vmem:[%s4 + $0x18] sm:$0xff] %v218
    // Predicated region
    $region30: #{decoder_forward.4} parent=1 // pred_check
      _
    $region31: #{decoder_forward.4} parent=1 // pred_check_branch
      %224 = sbr.rel (0) target = $region33
    $region32: #{decoder_forward.4} parent=1 // pred_region
      _
    $region33: #{decoder_forward.4} parent=1 // pred_fallthru
      _
    // Predicated region
    $region34: #{decoder_forward.4} parent=1 // pred_check
      _
    $region35: #{decoder_forward.4} parent=1 // pred_check_branch
      %226 = sbr.rel (0) target = $region37
    $region36: #{decoder_forward.4} parent=1 // pred_region
      _
    $region37: #{decoder_forward.4} parent=1 // pred_fallthru
      _
    %227 = vsyncpa [#allocation3], 1
    %228 = vsyncpa [#allocation5], 1

// kernel: decoder_forward.5
$region0: #{decoder_forward.5}
  #allocation0 [shape = 'u32[]', space=smem, size = 0x4, offset = 0x4, fixed_abs, tag = 'smem constant byte address 0x4 - core index']
  #allocation1 [shape = 'u32[144,128]{1,0:T(1,128)}', space=vmem, size = 0x12000, scoped, tag = 'internal scratch']
  %s0 = inlined_call_operand.vmem [shape: f32[24,256], index: 0, kind: input, shape index: {}]
  %s1 = inlined_call_operand.hbm [shape: f32[256,256], index: 1, kind: input, shape index: {}]
  %s2 = inlined_call_operand.hbm [shape: f32[1,64], index: 2, kind: input, shape index: {}]
  %s3 = inlined_call_operand.hbm [shape: f32[1,64], index: 3, kind: input, shape index: {}]
  %s4 = inlined_call_operand.vmem [shape: f32[24,256], index: 4, kind: output, shape index: {}]
  %s5 = sld [smem:[#allocation0]]
  $region38: #{decoder_forward.5} parent=0
    _
  %s7 = ssub.s32 1, %s5
  %s8 = scalar_select 0, %s7, %s5
  $region1: #{decoder_forward.5} parent=0
    #allocation2 [shape = 'u8[262144]{0}', space=vmem, size = 0x40000, scoped, tag = 'input window, operand 1, single buffered']
    #allocation3 [shape = 's32[1]{0}', space=sflag, size = 0x4, scoped, tag = 'scoped memory for decoder_forward.5']
    #allocation4 [shape = 'u8[512]{0}', space=vmem, size = 0x400, scoped, tag = 'input window, operand 2, single buffered']
    #allocation5 [shape = 's32[1]{0}', space=sflag, size = 0x4, scoped, tag = 'scoped memory for decoder_forward.5']
    #allocation6 [shape = 'u8[512]{0}', space=vmem, size = 0x400, scoped, tag = 'input window, operand 3, single buffered']
    %9 = vsyncpa [#allocation3], 0
    %10 = vsyncpa [#allocation5], 0
    // Predicated region
    $region2: #{decoder_forward.5} parent=1 // pred_check
      _
    $region3: #{decoder_forward.5} parent=1 // pred_check_branch
      %12 = sbr.rel (0) target = $region5
    $region4: #{decoder_forward.5} parent=1 // pred_region
      _
    $region5: #{decoder_forward.5} parent=1 // pred_fallthru
      _
    // Predicated region
    $region6: #{decoder_forward.5} parent=1 // pred_check
      _
    $region7: #{decoder_forward.5} parent=1 // pred_check_branch
      %14 = sbr.rel (0) target = $region9
    $region8: #{decoder_forward.5} parent=1 // pred_region
      %s16 = ssub.s32 8192, 8192
      %17 = vsyncadd [#allocation3], %s16
      %s18 = sshll.u32 [#allocation2], 4
      %s19 = int_to_ptr.vmem [resolvable:$true] %s18
      %24 = dma.hbm_to_vmem [thread:$0]  %s1, 8192, %s19, [#allocation3], 256, 256, 16
    $region9: #{decoder_forward.5} parent=1 // pred_fallthru
      _
    // Predicated region
    $region10: #{decoder_forward.5} parent=1 // pred_check
      _
    $region11: #{decoder_forward.5} parent=1 // pred_check_branch
      %26 = sbr.rel (0) target = $region13
    $region12: #{decoder_forward.5} parent=1 // pred_region
      %s28 = ssub.s32 16, 16
      %29 = vsyncadd [#allocation5], %s28
      %s31 = sshll.u32 [#allocation4], 4
      %s32 = int_to_ptr.vmem [resolvable:$true] %s31
      %34 = dma.hbm_to_vmem [thread:$0]  %s2, 16, %s32, [#allocation5]
    $region13: #{decoder_forward.5} parent=1 // pred_fallthru
      _
    // Predicated region
    $region14: #{decoder_forward.5} parent=1 // pred_check
      _
    $region15: #{decoder_forward.5} parent=1 // pred_check_branch
      %36 = sbr.rel (0) target = $region17
    $region16: #{decoder_forward.5} parent=1 // pred_region
      %s38 = ssub.s32 16, 16
      %39 = vsyncadd [#allocation5], %s38
      %s41 = sshll.u32 [#allocation6], 4
      %s42 = int_to_ptr.vmem [resolvable:$true] %s41
      %44 = dma.hbm_to_vmem [thread:$0]  %s3, 16, %s42, [#allocation5]
    $region17: #{decoder_forward.5} parent=1 // pred_fallthru
      _
    // Predicated region
    $region18: #{decoder_forward.5} parent=1 // pred_check
      _
    $region19: #{decoder_forward.5} parent=1 // pred_check_branch
      %46 = sbr.rel (0) target = $region21
    $region20: #{decoder_forward.5} parent=1 // pred_region
      %47 = dma.done [#allocation3], 8192
    $region21: #{decoder_forward.5} parent=1 // pred_fallthru
      _
    // Predicated region
    $region22: #{decoder_forward.5} parent=1 // pred_check
      _
    $region23: #{decoder_forward.5} parent=1 // pred_check_branch
      %49 = sbr.rel (0) target = $region25
    $region24: #{decoder_forward.5} parent=1 // pred_region
      %50 = dma.done [#allocation5], 16
    $region25: #{decoder_forward.5} parent=1 // pred_fallthru
      _
    // Predicated region
    $region26: #{decoder_forward.5} parent=1 // pred_check
      _
    $region27: #{decoder_forward.5} parent=1 // pred_check_branch
      %52 = sbr.rel (0) target = $region29
    $region28: #{decoder_forward.5} parent=1 // pred_region
      %53 = dma.done [#allocation5], 16
    $region29: #{decoder_forward.5} parent=1 // pred_fallthru
      _
    %v54 = vld [vmem:[%s0] sm:$0xff]
    %v55 = vld [vmem:[%s0 + $0x8] sm:$0xff]
    %v56 = vld [vmem:[%s0 + $0x10] sm:$0xff]
    %v57 = vld [vmem:[%s0 + $0x18] sm:$0xff]
    %v58 = vld [vmem:[%s0 + $0x20] sm:$0xff]
    %v59 = vld [vmem:[%s0 + $0x28] sm:$0xff]
    %v60 = vld [vmem:[#allocation2] sm:$0xff]
    %v61 = vld [vmem:[#allocation2 + $0x8] sm:$0xff]
    %v62 = vld [vmem:[#allocation2 + $0x10] sm:$0xff]
    %v63 = vld [vmem:[#allocation2 + $0x18] sm:$0xff]
    %v64 = vld [vmem:[#allocation2 + $0x20] sm:$0xff]
    %v65 = vld [vmem:[#allocation2 + $0x28] sm:$0xff]
    %v66 = vld [vmem:[#allocation2 + $0x30] sm:$0xff]
    %v67 = vld [vmem:[#allocation2 + $0x38] sm:$0xff]
    %v68 = vld [vmem:[#allocation2 + $0x40] sm:$0xff]
    %v69 = vld [vmem:[#allocation2 + $0x48] sm:$0xff]
    %v70 = vld [vmem:[#allocation2 + $0x50] sm:$0xff]
    %v71 = vld [vmem:[#allocation2 + $0x58] sm:$0xff]
    %v72 = vld [vmem:[#allocation2 + $0x60] sm:$0xff]
    %v73 = vld [vmem:[#allocation2 + $0x68] sm:$0xff]
    %v74 = vld [vmem:[#allocation2 + $0x70] sm:$0xff]
    %v75 = vld [vmem:[#allocation2 + $0x78] sm:$0xff]
    %v76 = vld [vmem:[#allocation2 + $0x80] sm:$0xff]
    %v77 = vld [vmem:[#allocation2 + $0x88] sm:$0xff]
    %v78 = vld [vmem:[#allocation2 + $0x90] sm:$0xff]
    %v79 = vld [vmem:[#allocation2 + $0x98] sm:$0xff]
    %v80 = vld [vmem:[#allocation2 + $0xa0] sm:$0xff]
    %v81 = vld [vmem:[#allocation2 + $0xa8] sm:$0xff]
    %v82 = vld [vmem:[#allocation2 + $0xb0] sm:$0xff]
    %v83 = vld [vmem:[#allocation2 + $0xb8] sm:$0xff]
    %v84 = vld [vmem:[#allocation2 + $0xc0] sm:$0xff]
    %v85 = vld [vmem:[#allocation2 + $0xc8] sm:$0xff]
    %v86 = vld [vmem:[#allocation2 + $0xd0] sm:$0xff]
    %v87 = vld [vmem:[#allocation2 + $0xd8] sm:$0xff]
    %v88 = vld [vmem:[#allocation2 + $0xe0] sm:$0xff]
    %v89 = vld [vmem:[#allocation2 + $0xe8] sm:$0xff]
    %v90 = vld [vmem:[#allocation2 + $0xf0] sm:$0xff]
    %v91 = vld [vmem:[#allocation2 + $0xf8] sm:$0xff]
    %v92 = vld [vmem:[#allocation2 + $0x100] sm:$0xff]
    %v93 = vld [vmem:[#allocation2 + $0x108] sm:$0xff]
    %v94 = vld [vmem:[#allocation2 + $0x110] sm:$0xff]
    %v95 = vld [vmem:[#allocation2 + $0x118] sm:$0xff]
    %v96 = vld [vmem:[#allocation2 + $0x120] sm:$0xff]
    %v97 = vld [vmem:[#allocation2 + $0x128] sm:$0xff]
    %v98 = vld [vmem:[#allocation2 + $0x130] sm:$0xff]
    %v99 = vld [vmem:[#allocation2 + $0x138] sm:$0xff]
    %v100 = vld [vmem:[#allocation2 + $0x140] sm:$0xff]
    %v101 = vld [vmem:[#allocation2 + $0x148] sm:$0xff]
    %v102 = vld [vmem:[#allocation2 + $0x150] sm:$0xff]
    %v103 = vld [vmem:[#allocation2 + $0x158] sm:$0xff]
    %v104 = vld [vmem:[#allocation2 + $0x160] sm:$0xff]
    %v105 = vld [vmem:[#allocation2 + $0x168] sm:$0xff]
    %v106 = vld [vmem:[#allocation2 + $0x170] sm:$0xff]
    %v107 = vld [vmem:[#allocation2 + $0x178] sm:$0xff]
    %v108 = vld [vmem:[#allocation2 + $0x180] sm:$0xff]
    %v109 = vld [vmem:[#allocation2 + $0x188] sm:$0xff]
    %v110 = vld [vmem:[#allocation2 + $0x190] sm:$0xff]
    %v111 = vld [vmem:[#allocation2 + $0x198] sm:$0xff]
    %v112 = vld [vmem:[#allocation2 + $0x1a0] sm:$0xff]
    %v113 = vld [vmem:[#allocation2 + $0x1a8] sm:$0xff]
    %v114 = vld [vmem:[#allocation2 + $0x1b0] sm:$0xff]
    %v115 = vld [vmem:[#allocation2 + $0x1b8] sm:$0xff]
    %v116 = vld [vmem:[#allocation2 + $0x1c0] sm:$0xff]
    %v117 = vld [vmem:[#allocation2 + $0x1c8] sm:$0xff]
    %v118 = vld [vmem:[#allocation2 + $0x1d0] sm:$0xff]
    %v119 = vld [vmem:[#allocation2 + $0x1d8] sm:$0xff]
    %v120 = vld [vmem:[#allocation2 + $0x1e0] sm:$0xff]
    %v121 = vld [vmem:[#allocation2 + $0x1e8] sm:$0xff]
    %v122 = vld [vmem:[#allocation2 + $0x1f0] sm:$0xff]
    %v123 = vld [vmem:[#allocation2 + $0x1f8] sm:$0xff]
    %124 = vmatprep.subr.mxu0 %v61
    %125 = vmatpush1.msra.mxu0 %v60
    %126 = vmatprep.subr.mxu0 %v63
    %127 = vmatpush1.msra.mxu0 %v62
    %128 = vmatprep.subr.mxu0 %v65
    %129 = vmatpush1.msra.mxu0 %v64
    %130 = vmatprep.subr.mxu0 %v67
    %131 = vmatpush1.msra.mxu0 %v66
    %132 = vmatprep.subr.mxu0 %v69
    %133 = vmatpush1.msra.mxu0 %v68
    %134 = vmatprep.subr.mxu0 %v71
    %135 = vmatpush1.msra.mxu0 %v70
    %136 = vmatprep.subr.mxu0 %v73
    %137 = vmatpush1.msra.mxu0 %v72
    %138 = vmatprep.subr.mxu0 %v75
    %139 = vmatpush1.msra.mxu0 %v74
    %140 = vmatprep.subr.mxu0 %v77
    %141 = vmatpush1.msra.mxu0 %v76
    %142 = vmatprep.subr.mxu0 %v79
    %143 = vmatpush1.msra.mxu0 %v78
    %144 = vmatprep.subr.mxu0 %v81
    %145 = vmatpush1.msra.mxu0 %v80
    %146 = vmatprep.subr.mxu0 %v83
    %147 = vmatpush1.msra.mxu0 %v82
    %148 = vmatprep.subr.mxu0 %v85
    %149 = vmatpush1.msra.mxu0 %v84
    %150 = vmatprep.subr.mxu0 %v87
    %151 = vmatpush1.msra.mxu0 %v86
    %152 = vmatprep.subr.mxu0 %v89
    %153 = vmatpush1.msra.mxu0 %v88
    %154 = vmatprep.subr.mxu0 %v91
    %155 = vmatpush1.msra.mxu0 %v90
    %156 = vmatprep.subr.mxu0 %v93
    %157 = vmatpush1.msra.mxu0 %v92
    %158 = vmatprep.subr.mxu0 %v95
    %159 = vmatpush1.msra.mxu0 %v94
    %160 = vmatprep.subr.mxu0 %v97
    %161 = vmatpush1.msra.mxu0 %v96
    %162 = vmatprep.subr.mxu0 %v99
    %163 = vmatpush1.msra.mxu0 %v98
    %164 = vmatprep.subr.mxu0 %v101
    %165 = vmatpush1.msra.mxu0 %v100
    %166 = vmatprep.subr.mxu0 %v103
    %167 = vmatpush1.msra.mxu0 %v102
    %168 = vmatprep.subr.mxu0 %v105
    %169 = vmatpush1.msra.mxu0 %v104
    %170 = vmatprep.subr.mxu0 %v107
    %171 = vmatpush1.msra.mxu0 %v106
    %172 = vmatprep.subr.mxu0 %v109
    %173 = vmatpush1.msra.mxu0 %v108
    %174 = vmatprep.subr.mxu0 %v111
    %175 = vmatpush1.msra.mxu0 %v110
    %176 = vmatprep.subr.mxu0 %v113
    %177 = vmatpush1.msra.mxu0 %v112
    %178 = vmatprep.subr.mxu0 %v115
    %179 = vmatpush1.msra.mxu0 %v114
    %180 = vmatprep.subr.mxu0 %v117
    %181 = vmatpush1.msra.mxu0 %v116
    %182 = vmatprep.subr.mxu0 %v119
    %183 = vmatpush1.msra.mxu0 %v118
    %184 = vmatprep.subr.mxu0 %v121
    %185 = vmatpush1.msra.mxu0 %v120
    %186 = vmatprep.subr.mxu0 %v123
    %187 = vmatpush1.msra.mxu0 %v122
    %188 = vmatprep.mubr.f32.mxu0 %v55
    %189 = vmatmul.mubr.f32.gmra.mrb[0].mxu0 %v54
    %v190 = vpop.f32.mrb[0].mxu0
    %v191 = vadd.f32 0.0, %v190
    %v192 = vpop.f32.mrb[0].mxu0
    %v193 = vadd.f32 0.0, %v192
    %194 = vmatprep.mubr.f32.mxu0 %v57
    %195 = vmatmul.mubr.f32.gmra.mrb[0].mxu0 %v56
    %v196 = vpop.f32.mrb[0].mxu0
    %v197 = vadd.f32 0.0, %v196
    %v198 = vpop.f32.mrb[0].mxu0
    %v199 = vadd.f32 0.0, %v198
    %200 = vmatprep.mubr.f32.mxu0 %v59
    %201 = vmatmul.mubr.f32.gmra.mrb[0].mxu0 %v58
    %v202 = vpop.f32.mrb[0].mxu0
    %v203 = vadd.f32 0.0, %v202
    %v204 = vpop.f32.mrb[0].mxu0
    %v205 = vadd.f32 0.0, %v204
    %206 = vdwg.mxu0
    %210 = vrot.lane.b32.xlu0 %v191, 64
    %v211 = vpop.permute.xlu0 %210
    %212 = vrot.lane.b32.xlu0 %v197, 64
    %v213 = vpop.permute.xlu0 %212
    %214 = vrot.lane.b32.xlu0 %v203, 64
    %v215 = vpop.permute.xlu0 %214
    %v219 = vadd.f32 %v191, %v211
    %v220 = vadd.f32 %v197, %v213
    %v221 = vadd.f32 %v203, %v215
    %v222 = vadd.f32 %v219, %v193
    %v223 = vadd.f32 %v220, %v199
    %v224 = vadd.f32 %v221, %v205
    %228 = vrot.lane.b32.xlu0 %v193, 64
    %v229 = vpop.permute.xlu0 %228
    %230 = vrot.lane.b32.xlu0 %v199, 64
    %v231 = vpop.permute.xlu0 %230
    %232 = vrot.lane.b32.xlu0 %v205, 64
    %v233 = vpop.permute.xlu0 %232
    %v237 = vadd.f32 %v222, %v229
    %v238 = vadd.f32 %v223, %v231
    %v239 = vadd.f32 %v224, %v233
    %vm240 = vcmask 523264
    %v241 = vsel %vm240, %v237, 0.0
    %v242 = vsel %vm240, %v238, 0.0
    %v243 = vadd.f32 %v241, %v242
    %vm244 = vcmask 517120
    %v245 = vsel %vm244, %v239, 0.0
    %v246 = vadd.f32 %v243, %v245
    %v247 = vrot.slane %v246, 4
    %v248 = vadd.f32 %v246, %v247
    %v249 = vrot.slane %v248, 2
    %v250 = vadd.f32 %v248, %v249
    %v251 = vrot.slane %v250, 1
    %v252 = vadd.f32 %v250, %v251
    %v253 = vrcp.pop 72.0
    %v254 = vmul.f32 %v252, %v253
    %v255 = vsub.f32 %v191, %v254
    %v256 = vsub.f32 %v197, %v254
    %v257 = vsub.f32 %v203, %v254
    %v258 = vmul.f32 %v255, %v255
    %v259 = vmul.f32 %v256, %v256
    %v260 = vmul.f32 %v257, %v257
    %v261 = vsel %vm240, %v258, 0.0
    %v262 = vsel %vm240, %v259, 0.0
    %v263 = vadd.f32 %v261, %v262
    %v264 = vsel %vm244, %v260, 0.0
    %v265 = vadd.f32 %v263, %v264
    %v266 = vrot.slane %v265, 4
    %v267 = vadd.f32 %v265, %v266
    %v268 = vrot.slane %v267, 2
    %v269 = vadd.f32 %v267, %v268
    %v270 = vrot.slane %v269, 1
    %v271 = vadd.f32 %v269, %v270
    %273 = vrot.lane.b32.xlu0 %v254, 64
    %v274 = vpop.permute.xlu0 %273
    %v276 = vsub.f32 %v191, %v274
    %v277 = vsub.f32 %v197, %v274
    %v278 = vsub.f32 %v203, %v274
    %v279 = vmul.f32 %v276, %v276
    %v280 = vmul.f32 %v277, %v277
    %v281 = vmul.f32 %v278, %v278
    %vm282 = vcmask 1048064
    %v283 = vsel %vm282, %v279, 0.0
    %v284 = vsel %vm282, %v280, 0.0
    %v285 = vadd.f32 %v283, %v284
    %vm286 = vcmask 1041920
    %v287 = vsel %vm286, %v281, 0.0
    %v288 = vadd.f32 %v285, %v287
    %v289 = vrot.slane %v288, 4
    %v290 = vadd.f32 %v288, %v289
    %v291 = vrot.slane %v290, 2
    %v292 = vadd.f32 %v290, %v291
    %v293 = vrot.slane %v292, 1
    %v294 = vadd.f32 %v292, %v293
    %296 = vrot.lane.b32.xlu0 %v294, 64
    %v297 = vpop.permute.xlu0 %296
    %v299 = vadd.f32 %v271, %v297
    %v300 = vsub.f32 %v193, %v254
    %v301 = vsub.f32 %v199, %v254
    %v302 = vsub.f32 %v205, %v254
    %v303 = vmul.f32 %v300, %v300
    %v304 = vmul.f32 %v301, %v301
    %v305 = vmul.f32 %v302, %v302
    %v306 = vsel %vm240, %v303, 0.0
    %v307 = vsel %vm240, %v304, 0.0
    %v308 = vadd.f32 %v306, %v307
    %v309 = vsel %vm244, %v305, 0.0
    %v310 = vadd.f32 %v308, %v309
    %v311 = vrot.slane %v310, 4
    %v312 = vadd.f32 %v310, %v311
    %v313 = vrot.slane %v312, 2
    %v314 = vadd.f32 %v312, %v313
    %v315 = vrot.slane %v314, 1
    %v316 = vadd.f32 %v314, %v315
    %v317 = vadd.f32 %v299, %v316
    %v318 = vsub.f32 %v193, %v274
    %v319 = vsub.f32 %v199, %v274
    %v320 = vsub.f32 %v205, %v274
    %v321 = vmul.f32 %v318, %v318
    %v322 = vmul.f32 %v319, %v319
    %v323 = vmul.f32 %v320, %v320
    %v324 = vsel %vm282, %v321, 0.0
    %v325 = vsel %vm282, %v322, 0.0
    %v326 = vadd.f32 %v324, %v325
    %v327 = vsel %vm286, %v323, 0.0
    %v328 = vadd.f32 %v326, %v327
    %v329 = vrot.slane %v328, 4
    %v330 = vadd.f32 %v328, %v329
    %v331 = vrot.slane %v330, 2
    %v332 = vadd.f32 %v330, %v331
    %v333 = vrot.slane %v332, 1
    %v334 = vadd.f32 %v332, %v333
    %336 = vrot.lane.b32.xlu0 %v334, 64
    %v337 = vpop.permute.xlu0 %336
    %v339 = vadd.f32 %v317, %v337
    %v340 = vmul.f32 %v339, %v253
    %v341 = vadd.f32 %v340, 1e-05
    %v342 = vrsqrt.pop %v341
    %v343 = vld [vmem:[#allocation4] sm:$0x1]
    %v344 = vmul.f32 %v343, %v342
    %v345 = vld [vmem:[#allocation6] sm:$0x1]
    %v346 = vmul.f32 %v254, %v344
    %v347 = vsub.f32 %v345, %v346
    %v349 = vlaneseq
    %v350 = vshrl.u32 %v349, 7
    %v351 = vsub.s32 0, %v350
    %v352 = vrot.slane %v344, %v351
    %353 = vrot.lane.b32.xlu0 %v352, 64
    %v354 = vpop.permute.xlu0 %353
    %v356 = vsel %vm240, %v344, %v354
    %v358 = vlaneseq
    %v359 = vshrl.u32 %v358, 7
    %v360 = vsub.s32 0, %v359
    %v361 = vrot.slane %v347, %v360
    %362 = vrot.lane.b32.xlu0 %v361, 64
    %v363 = vpop.permute.xlu0 %362
    %v365 = vsel %vm240, %v347, %v363
    %v366 = vlaneseq
    %v367 = vshrl.u32 %v366, 7
    %v368 = vsub.s32 0, %v367
    %v369 = vrot.slane %v356, %v368
    %v370 = vmul.f32 %v191, %v369
    %v371 = vmul.f32 %v193, %v369
    %v372 = vmul.f32 %v197, %v369
    %v373 = vmul.f32 %v199, %v369
    %v374 = vmul.f32 %v203, %v369
    %v375 = vmul.f32 %v205, %v369
    %v376 = vlaneseq
    %v377 = vshrl.u32 %v376, 7
    %v378 = vsub.s32 0, %v377
    %v379 = vrot.slane %v365, %v378
    %v380 = vadd.f32 %v370, %v379
    %v381 = vadd.f32 %v371, %v379
    %v382 = vadd.f32 %v372, %v379
    %v383 = vadd.f32 %v373, %v379
    %v384 = vadd.f32 %v374, %v379
    %v385 = vadd.f32 %v375, %v379
    %v386 = vmax.f32 %v380, 0.0
    %v387 = vmax.f32 %v381, 0.0
    %v388 = vmax.f32 %v382, 0.0
    %v389 = vmax.f32 %v383, 0.0
    %v390 = vmax.f32 %v384, 0.0
    %v391 = vmax.f32 %v385, 0.0
    %392 = vst [vmem:[%s4] sm:$0xff] %v386
    %393 = vst [vmem:[%s4 + $0x8] sm:$0xff] %v387
    %394 = vst [vmem:[%s4 + $0x10] sm:$0xff] %v388
    %395 = vst [vmem:[%s4 + $0x18] sm:$0xff] %v389
    %396 = vst [vmem:[%s4 + $0x20] sm:$0xff] %v390
    %397 = vst [vmem:[%s4 + $0x28] sm:$0xff] %v391
    // Predicated region
    $region30: #{decoder_forward.5} parent=1 // pred_check
      _
    $region31: #{decoder_forward.5} parent=1 // pred_check_branch
      %399 = sbr.rel (0) target = $region33
    $region32: #{decoder_forward.5} parent=1 // pred_region
      _
    $region33: #{decoder_forward.5} parent=1 // pred_fallthru
      _
    // Predicated region
    $region34: #{decoder_forward.5} parent=1 // pred_check
      _
    $region35: #{decoder_forward.5} parent=1 // pred_check_branch
      %401 = sbr.rel (0) target = $region37
    $region36: #{decoder_forward.5} parent=1 // pred_region
      _
    $region37: #{decoder_forward.5} parent=1 // pred_fallthru
      _
    %402 = vsyncpa [#allocation3], 1
    %403 = vsyncpa [#allocation5], 1

// kernel: decoder_forward.6
$region0: #{decoder_forward.6}
  #allocation0 [shape = 'u32[]', space=smem, size = 0x4, offset = 0x4, fixed_abs, tag = 'smem constant byte address 0x4 - core index']
  #allocation1 [shape = 'u32[144,128]{1,0:T(1,128)}', space=vmem, size = 0x12000, scoped, tag = 'internal scratch']
  %s0 = inlined_call_operand.vmem [shape: f32[104,256], index: 0, kind: input, shape index: {}]
  %s1 = inlined_call_operand.vmem [shape: f32[256,128], index: 1, kind: input, shape index: {}]
  %s2 = inlined_call_operand.vmem [shape: f32[1,32], index: 2, kind: input, shape index: {}]
  %s3 = inlined_call_operand.vmem [shape: f32[1,32], index: 3, kind: input, shape index: {}]
  %s4 = inlined_call_operand.vmem [shape: f32[104,128], index: 4, kind: output, shape index: {}]
  %s5 = sld [smem:[#allocation0]]
  $region26: #{decoder_forward.6} parent=0
    _
  %s7 = ssub.s32 1, %s5
  %s8 = scalar_select 0, %s7, %s5
  // Predicated region
  $region2: #{decoder_forward.6} parent=0 // pred_check
    _
  $region3: #{decoder_forward.6} parent=0 // pred_check_branch
    %10 = sbr.rel (0) target = $region5
  $region4: #{decoder_forward.6} parent=0 // pred_region
    _
  $region5: #{decoder_forward.6} parent=0 // pred_fallthru
    _
  // Predicated region
  $region6: #{decoder_forward.6} parent=0 // pred_check
    _
  $region7: #{decoder_forward.6} parent=0 // pred_check_branch
    %12 = sbr.rel (0) target = $region9
  $region8: #{decoder_forward.6} parent=0 // pred_region
    _
  $region9: #{decoder_forward.6} parent=0 // pred_fallthru
    _
  // Predicated region
  $region10: #{decoder_forward.6} parent=0 // pred_check
    _
  $region11: #{decoder_forward.6} parent=0 // pred_check_branch
    %14 = sbr.rel (0) target = $region13
  $region12: #{decoder_forward.6} parent=0 // pred_region
    _
  $region13: #{decoder_forward.6} parent=0 // pred_fallthru
    _
  // Predicated region
  $region14: #{decoder_forward.6} parent=0 // pred_check
    _
  $region15: #{decoder_forward.6} parent=0 // pred_check_branch
    %16 = sbr.rel (0) target = $region17
  $region16: #{decoder_forward.6} parent=0 // pred_region
    _
  $region17: #{decoder_forward.6} parent=0 // pred_fallthru
    _
  %v17 = vld [vmem:[%s0] sm:$0xff]
  %v18 = vld [vmem:[%s0 + $0x8] sm:$0xff]
  %v19 = vld [vmem:[%s0 + $0x10] sm:$0xff]
  %v20 = vld [vmem:[%s0 + $0x18] sm:$0xff]
  %v21 = vld [vmem:[%s0 + $0x20] sm:$0xff]
  %v22 = vld [vmem:[%s0 + $0x28] sm:$0xff]
  %v23 = vld [vmem:[%s0 + $0x30] sm:$0xff]
  %v24 = vld [vmem:[%s0 + $0x38] sm:$0xff]
  %v25 = vld [vmem:[%s0 + $0x40] sm:$0xff]
  %v26 = vld [vmem:[%s0 + $0x48] sm:$0xff]
  %v27 = vld [vmem:[%s0 + $0x50] sm:$0xff]
  %v28 = vld [vmem:[%s0 + $0x58] sm:$0xff]
  %v29 = vld [vmem:[%s0 + $0x60] sm:$0xff]
  %v30 = vld [vmem:[%s0 + $0x68] sm:$0xff]
  %v31 = vld [vmem:[%s0 + $0x70] sm:$0xff]
  %v32 = vld [vmem:[%s0 + $0x78] sm:$0xff]
  %v33 = vld [vmem:[%s0 + $0x80] sm:$0xff]
  %v34 = vld [vmem:[%s0 + $0x88] sm:$0xff]
  %v35 = vld [vmem:[%s0 + $0x90] sm:$0xff]
  %v36 = vld [vmem:[%s0 + $0x98] sm:$0xff]
  %v37 = vld [vmem:[%s0 + $0xa0] sm:$0xff]
  %v38 = vld [vmem:[%s0 + $0xa8] sm:$0xff]
  %v39 = vld [vmem:[%s0 + $0xb0] sm:$0xff]
  %v40 = vld [vmem:[%s0 + $0xb8] sm:$0xff]
  %v41 = vld [vmem:[%s0 + $0xc0] sm:$0xff]
  %v42 = vld [vmem:[%s0 + $0xc8] sm:$0xff]
  %v43 = vld [vmem:[%s1] sm:$0xff]
  %v44 = vld [vmem:[%s1 + $0x8] sm:$0xff]
  %v45 = vld [vmem:[%s1 + $0x10] sm:$0xff]
  %v46 = vld [vmem:[%s1 + $0x18] sm:$0xff]
  %v47 = vld [vmem:[%s1 + $0x20] sm:$0xff]
  %v48 = vld [vmem:[%s1 + $0x28] sm:$0xff]
  %v49 = vld [vmem:[%s1 + $0x30] sm:$0xff]
  %v50 = vld [vmem:[%s1 + $0x38] sm:$0xff]
  %v51 = vld [vmem:[%s1 + $0x40] sm:$0xff]
  %v52 = vld [vmem:[%s1 + $0x48] sm:$0xff]
  %v53 = vld [vmem:[%s1 + $0x50] sm:$0xff]
  %v54 = vld [vmem:[%s1 + $0x58] sm:$0xff]
  %v55 = vld [vmem:[%s1 + $0x60] sm:$0xff]
  %v56 = vld [vmem:[%s1 + $0x68] sm:$0xff]
  %v57 = vld [vmem:[%s1 + $0x70] sm:$0xff]
  %v58 = vld [vmem:[%s1 + $0x78] sm:$0xff]
  %v59 = vld [vmem:[%s1 + $0x80] sm:$0xff]
  %v60 = vld [vmem:[%s1 + $0x88] sm:$0xff]
  %v61 = vld [vmem:[%s1 + $0x90] sm:$0xff]
  %v62 = vld [vmem:[%s1 + $0x98] sm:$0xff]
  %v63 = vld [vmem:[%s1 + $0xa0] sm:$0xff]
  %v64 = vld [vmem:[%s1 + $0xa8] sm:$0xff]
  %v65 = vld [vmem:[%s1 + $0xb0] sm:$0xff]
  %v66 = vld [vmem:[%s1 + $0xb8] sm:$0xff]
  %v67 = vld [vmem:[%s1 + $0xc0] sm:$0xff]
  %v68 = vld [vmem:[%s1 + $0xc8] sm:$0xff]
  %v69 = vld [vmem:[%s1 + $0xd0] sm:$0xff]
  %v70 = vld [vmem:[%s1 + $0xd8] sm:$0xff]
  %v71 = vld [vmem:[%s1 + $0xe0] sm:$0xff]
  %v72 = vld [vmem:[%s1 + $0xe8] sm:$0xff]
  %v73 = vld [vmem:[%s1 + $0xf0] sm:$0xff]
  %v74 = vld [vmem:[%s1 + $0xf8] sm:$0xff]
  %75 = vmatprep.subr.mxu0 0.0
  %76 = vmatpush1.msra.mxu0 %v43
  %77 = vmatprep.subr.mxu0 0.0
  %78 = vmatpush1.msra.mxu0 %v44
  %79 = vmatprep.subr.mxu0 0.0
  %80 = vmatpush1.msra.mxu0 %v45
  %81 = vmatprep.subr.mxu0 0.0
  %82 = vmatpush1.msra.mxu0 %v46
  %83 = vmatprep.subr.mxu0 0.0
  %84 = vmatpush1.msra.mxu0 %v47
  %85 = vmatprep.subr.mxu0 0.0
  %86 = vmatpush1.msra.mxu0 %v48
  %87 = vmatprep.subr.mxu0 0.0
  %88 = vmatpush1.msra.mxu0 %v49
  %89 = vmatprep.subr.mxu0 0.0
  %90 = vmatpush1.msra.mxu0 %v50
  %91 = vmatprep.subr.mxu0 0.0
  %92 = vmatpush1.msra.mxu0 %v51
  %93 = vmatprep.subr.mxu0 0.0
  %94 = vmatpush1.msra.mxu0 %v52
  %95 = vmatprep.subr.mxu0 0.0
  %96 = vmatpush1.msra.mxu0 %v53
  %97 = vmatprep.subr.mxu0 0.0
  %98 = vmatpush1.msra.mxu0 %v54
  %99 = vmatprep.subr.mxu0 0.0
  %100 = vmatpush1.msra.mxu0 %v55
  %101 = vmatprep.subr.mxu0 0.0
  %102 = vmatpush1.msra.mxu0 %v56
  %103 = vmatprep.subr.mxu0 0.0
  %104 = vmatpush1.msra.mxu0 %v57
  %105 = vmatprep.subr.mxu0 0.0
  %106 = vmatpush1.msra.mxu0 %v58
  %107 = vmatprep.subr.mxu0 0.0
  %108 = vmatpush1.msra.mxu0 %v59
  %109 = vmatprep.subr.mxu0 0.0
  %110 = vmatpush1.msra.mxu0 %v60
  %111 = vmatprep.subr.mxu0 0.0
  %112 = vmatpush1.msra.mxu0 %v61
  %113 = vmatprep.subr.mxu0 0.0
  %114 = vmatpush1.msra.mxu0 %v62
  %115 = vmatprep.subr.mxu0 0.0
  %116 = vmatpush1.msra.mxu0 %v63
  %117 = vmatprep.subr.mxu0 0.0
  %118 = vmatpush1.msra.mxu0 %v64
  %119 = vmatprep.subr.mxu0 0.0
  %120 = vmatpush1.msra.mxu0 %v65
  %121 = vmatprep.subr.mxu0 0.0
  %122 = vmatpush1.msra.mxu0 %v66
  %123 = vmatprep.subr.mxu0 0.0
  %124 = vmatpush1.msra.mxu0 %v67
  %125 = vmatprep.subr.mxu0 0.0
  %126 = vmatpush1.msra.mxu0 %v68
  %127 = vmatprep.subr.mxu0 0.0
  %128 = vmatpush1.msra.mxu0 %v69
  %129 = vmatprep.subr.mxu0 0.0
  %130 = vmatpush1.msra.mxu0 %v70
  %131 = vmatprep.subr.mxu0 0.0
  %132 = vmatpush1.msra.mxu0 %v71
  %133 = vmatprep.subr.mxu0 0.0
  %134 = vmatpush1.msra.mxu0 %v72
  %135 = vmatprep.subr.mxu0 0.0
  %136 = vmatpush1.msra.mxu0 %v73
  %137 = vmatprep.subr.mxu0 0.0
  %138 = vmatpush1.msra.mxu0 %v74
  %139 = vmatprep.mubr.f32.mxu0 %v18
  %140 = vmatmul.mubr.f32.gmra.mrb[0].mxu0 %v17
  %v141 = vpop.f32.mrb[0].mxu0
  %v142 = vadd.f32 0.0, %v141
  %v143 = vpop.f32.mrb[0].mxu0
  %144 = vmatprep.mubr.f32.mxu0 %v20
  %145 = vmatmul.mubr.f32.gmra.mrb[0].mxu0 %v19
  %v146 = vpop.f32.mrb[0].mxu0
  %v147 = vadd.f32 0.0, %v146
  %v148 = vpop.f32.mrb[0].mxu0
  %149 = vmatprep.mubr.f32.mxu0 %v22
  %150 = vmatmul.mubr.f32.gmra.mrb[0].mxu0 %v21
  %v151 = vpop.f32.mrb[0].mxu0
  %v152 = vadd.f32 0.0, %v151
  %v153 = vpop.f32.mrb[0].mxu0
  %154 = vmatprep.mubr.f32.mxu0 %v24
  %155 = vmatmul.mubr.f32.gmra.mrb[0].mxu0 %v23
  %v156 = vpop.f32.mrb[0].mxu0
  %v157 = vadd.f32 0.0, %v156
  %v158 = vpop.f32.mrb[0].mxu0
  %159 = vmatprep.mubr.f32.mxu0 %v26
  %160 = vmatmul.mubr.f32.gmra.mrb[0].mxu0 %v25
  %v161 = vpop.f32.mrb[0].mxu0
  %v162 = vadd.f32 0.0, %v161
  %v163 = vpop.f32.mrb[0].mxu0
  %164 = vmatprep.mubr.f32.mxu0 %v28
  %165 = vmatmul.mubr.f32.gmra.mrb[0].mxu0 %v27
  %v166 = vpop.f32.mrb[0].mxu0
  %v167 = vadd.f32 0.0, %v166
  %v168 = vpop.f32.mrb[0].mxu0
  %169 = vmatprep.mubr.f32.mxu0 %v30
  %170 = vmatmul.mubr.f32.gmra.mrb[0].mxu0 %v29
  %v171 = vpop.f32.mrb[0].mxu0
  %v172 = vadd.f32 0.0, %v171
  %v173 = vpop.f32.mrb[0].mxu0
  %174 = vmatprep.mubr.f32.mxu0 %v32
  %175 = vmatmul.mubr.f32.gmra.mrb[0].mxu0 %v31
  %v176 = vpop.f32.mrb[0].mxu0
  %v177 = vadd.f32 0.0, %v176
  %v178 = vpop.f32.mrb[0].mxu0
  %179 = vmatprep.mubr.f32.mxu0 %v34
  %180 = vmatmul.mubr.f32.gmra.mrb[0].mxu0 %v33
  %v181 = vpop.f32.mrb[0].mxu0
  %v182 = vadd.f32 0.0, %v181
  %v183 = vpop.f32.mrb[0].mxu0
  %184 = vmatprep.mubr.f32.mxu0 %v36
  %185 = vmatmul.mubr.f32.gmra.mrb[0].mxu0 %v35
  %v186 = vpop.f32.mrb[0].mxu0
  %v187 = vadd.f32 0.0, %v186
  %v188 = vpop.f32.mrb[0].mxu0
  %189 = vmatprep.mubr.f32.mxu0 %v38
  %190 = vmatmul.mubr.f32.gmra.mrb[0].mxu0 %v37
  %v191 = vpop.f32.mrb[0].mxu0
  %v192 = vadd.f32 0.0, %v191
  %v193 = vpop.f32.mrb[0].mxu0
  %194 = vmatprep.mubr.f32.mxu0 %v40
  %195 = vmatmul.mubr.f32.gmra.mrb[0].mxu0 %v39
  %v196 = vpop.f32.mrb[0].mxu0
  %v197 = vadd.f32 0.0, %v196
  %v198 = vpop.f32.mrb[0].mxu0
  %199 = vmatprep.mubr.f32.mxu0 %v42
  %200 = vmatmul.mubr.f32.gmra.mrb[0].mxu0 %v41
  %v201 = vpop.f32.mrb[0].mxu0
  %v202 = vadd.f32 0.0, %v201
  %v203 = vpop.f32.mrb[0].mxu0
  %204 = vdwg.mxu0
  %218 = vrot.lane.b32.xlu0 %v142, 96
  %v219 = vpop.permute.xlu0 %218
  %220 = vrot.lane.b32.xlu0 %v147, 96
  %v221 = vpop.permute.xlu0 %220
  %222 = vrot.lane.b32.xlu0 %v152, 96
  %v223 = vpop.permute.xlu0 %222
  %224 = vrot.lane.b32.xlu0 %v157, 96
  %v225 = vpop.permute.xlu0 %224
  %226 = vrot.lane.b32.xlu0 %v162, 96
  %v227 = vpop.permute.xlu0 %226
  %228 = vrot.lane.b32.xlu0 %v167, 96
  %v229 = vpop.permute.xlu0 %228
  %230 = vrot.lane.b32.xlu0 %v172, 96
  %v231 = vpop.permute.xlu0 %230
  %232 = vrot.lane.b32.xlu0 %v177, 96
  %v233 = vpop.permute.xlu0 %232
  %234 = vrot.lane.b32.xlu0 %v182, 96
  %v235 = vpop.permute.xlu0 %234
  %236 = vrot.lane.b32.xlu0 %v187, 96
  %v237 = vpop.permute.xlu0 %236
  %238 = vrot.lane.b32.xlu0 %v192, 96
  %v239 = vpop.permute.xlu0 %238
  %240 = vrot.lane.b32.xlu0 %v197, 96
  %v241 = vpop.permute.xlu0 %240
  %242 = vrot.lane.b32.xlu0 %v202, 96
  %v243 = vpop.permute.xlu0 %242
  %v257 = vadd.f32 %v142, %v219
  %v258 = vadd.f32 %v147, %v221
  %v259 = vadd.f32 %v152, %v223
  %v260 = vadd.f32 %v157, %v225
  %v261 = vadd.f32 %v162, %v227
  %v262 = vadd.f32 %v167, %v229
  %v263 = vadd.f32 %v172, %v231
  %v264 = vadd.f32 %v177, %v233
  %v265 = vadd.f32 %v182, %v235
  %v266 = vadd.f32 %v187, %v237
  %v267 = vadd.f32 %v192, %v239
  %v268 = vadd.f32 %v197, %v241
  %v269 = vadd.f32 %v202, %v243
  %270 = vrot.lane.b32.xlu0 %v142, 64
  %v271 = vpop.permute.xlu0 %270
  %272 = vrot.lane.b32.xlu0 %v147, 64
  %v273 = vpop.permute.xlu0 %272
  %274 = vrot.lane.b32.xlu0 %v152, 64
  %v275 = vpop.permute.xlu0 %274
  %276 = vrot.lane.b32.xlu0 %v157, 64
  %v277 = vpop.permute.xlu0 %276
  %278 = vrot.lane.b32.xlu0 %v162, 64
  %v279 = vpop.permute.xlu0 %278
  %280 = vrot.lane.b32.xlu0 %v167, 64
  %v281 = vpop.permute.xlu0 %280
  %282 = vrot.lane.b32.xlu0 %v172, 64
  %v283 = vpop.permute.xlu0 %282
  %284 = vrot.lane.b32.xlu0 %v177, 64
  %v285 = vpop.permute.xlu0 %284
  %286 = vrot.lane.b32.xlu0 %v182, 64
  %v287 = vpop.permute.xlu0 %286
  %288 = vrot.lane.b32.xlu0 %v187, 64
  %v289 = vpop.permute.xlu0 %288
  %290 = vrot.lane.b32.xlu0 %v192, 64
  %v291 = vpop.permute.xlu0 %290
  %292 = vrot.lane.b32.xlu0 %v197, 64
  %v293 = vpop.permute.xlu0 %292
  %294 = vrot.lane.b32.xlu0 %v202, 64
  %v295 = vpop.permute.xlu0 %294
  %v309 = vadd.f32 %v257, %v271
  %v310 = vadd.f32 %v258, %v273
  %v311 = vadd.f32 %v259, %v275
  %v312 = vadd.f32 %v260, %v277
  %v313 = vadd.f32 %v261, %v279
  %v314 = vadd.f32 %v262, %v281
  %v315 = vadd.f32 %v263, %v283
  %v316 = vadd.f32 %v264, %v285
  %v317 = vadd.f32 %v265, %v287
  %v318 = vadd.f32 %v266, %v289
  %v319 = vadd.f32 %v267, %v291
  %v320 = vadd.f32 %v268, %v293
  %v321 = vadd.f32 %v269, %v295
  %322 = vrot.lane.b32.xlu0 %v142, 32
  %v323 = vpop.permute.xlu0 %322
  %324 = vrot.lane.b32.xlu0 %v147, 32
  %v325 = vpop.permute.xlu0 %324
  %326 = vrot.lane.b32.xlu0 %v152, 32
  %v327 = vpop.permute.xlu0 %326
  %328 = vrot.lane.b32.xlu0 %v157, 32
  %v329 = vpop.permute.xlu0 %328
  %330 = vrot.lane.b32.xlu0 %v162, 32
  %v331 = vpop.permute.xlu0 %330
  %332 = vrot.lane.b32.xlu0 %v167, 32
  %v333 = vpop.permute.xlu0 %332
  %334 = vrot.lane.b32.xlu0 %v172, 32
  %v335 = vpop.permute.xlu0 %334
  %336 = vrot.lane.b32.xlu0 %v177, 32
  %v337 = vpop.permute.xlu0 %336
  %338 = vrot.lane.b32.xlu0 %v182, 32
  %v339 = vpop.permute.xlu0 %338
  %340 = vrot.lane.b32.xlu0 %v187, 32
  %v341 = vpop.permute.xlu0 %340
  %342 = vrot.lane.b32.xlu0 %v192, 32
  %v343 = vpop.permute.xlu0 %342
  %344 = vrot.lane.b32.xlu0 %v197, 32
  %v345 = vpop.permute.xlu0 %344
  %346 = vrot.lane.b32.xlu0 %v202, 32
  %v347 = vpop.permute.xlu0 %346
  %v361 = vadd.f32 %v309, %v323
  %v362 = vadd.f32 %v310, %v325
  %v363 = vadd.f32 %v311, %v327
  %v364 = vadd.f32 %v312, %v329
  %v365 = vadd.f32 %v313, %v331
  %v366 = vadd.f32 %v314, %v333
  %v367 = vadd.f32 %v315, %v335
  %v368 = vadd.f32 %v316, %v337
  %v369 = vadd.f32 %v317, %v339
  %v370 = vadd.f32 %v318, %v341
  %v371 = vadd.f32 %v319, %v343
  %v372 = vadd.f32 %v320, %v345
  %v373 = vadd.f32 %v321, %v347
  %vm374 = vcmask 261120
  %v375 = vsel %vm374, %v361, 0.0
  %v376 = vsel %vm374, %v362, 0.0
  %v377 = vadd.f32 %v375, %v376
  %v378 = vsel %vm374, %v363, 0.0
  %v379 = vadd.f32 %v377, %v378
  %v380 = vsel %vm374, %v364, 0.0
  %v381 = vadd.f32 %v379, %v380
  %v382 = vsel %vm374, %v365, 0.0
  %v383 = vadd.f32 %v381, %v382
  %v384 = vsel %vm374, %v366, 0.0
  %v385 = vadd.f32 %v383, %v384
  %v386 = vsel %vm374, %v367, 0.0
  %v387 = vadd.f32 %v385, %v386
  %v388 = vsel %vm374, %v368, 0.0
  %v389 = vadd.f32 %v387, %v388
  %v390 = vsel %vm374, %v369, 0.0
  %v391 = vadd.f32 %v389, %v390
  %v392 = vsel %vm374, %v370, 0.0
  %v393 = vadd.f32 %v391, %v392
  %v394 = vsel %vm374, %v371, 0.0
  %v395 = vadd.f32 %v393, %v394
  %v396 = vsel %vm374, %v372, 0.0
  %v397 = vadd.f32 %v395, %v396
  %vm398 = vcmask 254976
  %v399 = vsel %vm398, %v373, 0.0
  %v400 = vadd.f32 %v397, %v399
  %v401 = vrot.slane %v400, 4
  %v402 = vadd.f32 %v400, %v401
  %v403 = vrot.slane %v402, 2
  %v404 = vadd.f32 %v402, %v403
  %v405 = vrot.slane %v404, 1
  %v406 = vadd.f32 %v404, %v405
  %v407 = vrcp.pop 392.0
  %v408 = vmul.f32 %v406, %v407
  %v409 = vsub.f32 %v142, %v408
  %v410 = vsub.f32 %v147, %v408
  %v411 = vsub.f32 %v152, %v408
  %v412 = vsub.f32 %v157, %v408
  %v413 = vsub.f32 %v162, %v408
  %v414 = vsub.f32 %v167, %v408
  %v415 = vsub.f32 %v172, %v408
  %v416 = vsub.f32 %v177, %v408
  %v417 = vsub.f32 %v182, %v408
  %v418 = vsub.f32 %v187, %v408
  %v419 = vsub.f32 %v192, %v408
  %v420 = vsub.f32 %v197, %v408
  %v421 = vsub.f32 %v202, %v408
  %v422 = vmul.f32 %v409, %v409
  %v423 = vmul.f32 %v410, %v410
  %v424 = vmul.f32 %v411, %v411
  %v425 = vmul.f32 %v412, %v412
  %v426 = vmul.f32 %v413, %v413
  %v427 = vmul.f32 %v414, %v414
  %v428 = vmul.f32 %v415, %v415
  %v429 = vmul.f32 %v416, %v416
  %v430 = vmul.f32 %v417, %v417
  %v431 = vmul.f32 %v418, %v418
  %v432 = vmul.f32 %v419, %v419
  %v433 = vmul.f32 %v420, %v420
  %v434 = vmul.f32 %v421, %v421
  %v435 = vsel %vm374, %v422, 0.0
  %v436 = vsel %vm374, %v423, 0.0
  %v437 = vadd.f32 %v435, %v436
  %v438 = vsel %vm374, %v424, 0.0
  %v439 = vadd.f32 %v437, %v438
  %v440 = vsel %vm374, %v425, 0.0
  %v441 = vadd.f32 %v439, %v440
  %v442 = vsel %vm374, %v426, 0.0
  %v443 = vadd.f32 %v441, %v442
  %v444 = vsel %vm374, %v427, 0.0
  %v445 = vadd.f32 %v443, %v444
  %v446 = vsel %vm374, %v428, 0.0
  %v447 = vadd.f32 %v445, %v446
  %v448 = vsel %vm374, %v429, 0.0
  %v449 = vadd.f32 %v447, %v448
  %v450 = vsel %vm374, %v430, 0.0
  %v451 = vadd.f32 %v449, %v450
  %v452 = vsel %vm374, %v431, 0.0
  %v453 = vadd.f32 %v451, %v452
  %v454 = vsel %vm374, %v432, 0.0
  %v455 = vadd.f32 %v453, %v454
  %v456 = vsel %vm374, %v433, 0.0
  %v457 = vadd.f32 %v455, %v456
  %v458 = vsel %vm398, %v434, 0.0
  %v459 = vadd.f32 %v457, %v458
  %v460 = vrot.slane %v459, 4
  %v461 = vadd.f32 %v459, %v460
  %v462 = vrot.slane %v461, 2
  %v463 = vadd.f32 %v461, %v462
  %v464 = vrot.slane %v463, 1
  %v465 = vadd.f32 %v463, %v464
  %467 = vrot.lane.b32.xlu0 %v408, 32
  %v468 = vpop.permute.xlu0 %467
  %v470 = vsub.f32 %v142, %v468
  %v471 = vsub.f32 %v147, %v468
  %v472 = vsub.f32 %v152, %v468
  %v473 = vsub.f32 %v157, %v468
  %v474 = vsub.f32 %v162, %v468
  %v475 = vsub.f32 %v167, %v468
  %v476 = vsub.f32 %v172, %v468
  %v477 = vsub.f32 %v177, %v468
  %v478 = vsub.f32 %v182, %v468
  %v479 = vsub.f32 %v187, %v468
  %v480 = vsub.f32 %v192, %v468
  %v481 = vsub.f32 %v197, %v468
  %v482 = vsub.f32 %v202, %v468
  %v483 = vmul.f32 %v470, %v470
  %v484 = vmul.f32 %v471, %v471
  %v485 = vmul.f32 %v472, %v472
  %v486 = vmul.f32 %v473, %v473
  %v487 = vmul.f32 %v474, %v474
  %v488 = vmul.f32 %v475, %v475
  %v489 = vmul.f32 %v476, %v476
  %v490 = vmul.f32 %v477, %v477
  %v491 = vmul.f32 %v478, %v478
  %v492 = vmul.f32 %v479, %v479
  %v493 = vmul.f32 %v480, %v480
  %v494 = vmul.f32 %v481, %v481
  %v495 = vmul.f32 %v482, %v482
  %vm496 = vcmask 523520
  %v497 = vsel %vm496, %v483, 0.0
  %v498 = vsel %vm496, %v484, 0.0
  %v499 = vadd.f32 %v497, %v498
  %v500 = vsel %vm496, %v485, 0.0
  %v501 = vadd.f32 %v499, %v500
  %v502 = vsel %vm496, %v486, 0.0
  %v503 = vadd.f32 %v501, %v502
  %v504 = vsel %vm496, %v487, 0.0
  %v505 = vadd.f32 %v503, %v504
  %v506 = vsel %vm496, %v488, 0.0
  %v507 = vadd.f32 %v505, %v506
  %v508 = vsel %vm496, %v489, 0.0
  %v509 = vadd.f32 %v507, %v508
  %v510 = vsel %vm496, %v490, 0.0
  %v511 = vadd.f32 %v509, %v510
  %v512 = vsel %vm496, %v491, 0.0
  %v513 = vadd.f32 %v511, %v512
  %v514 = vsel %vm496, %v492, 0.0
  %v515 = vadd.f32 %v513, %v514
  %v516 = vsel %vm496, %v493, 0.0
  %v517 = vadd.f32 %v515, %v516
  %v518 = vsel %vm496, %v494, 0.0
  %v519 = vadd.f32 %v517, %v518
  %vm520 = vcmask 517376
  %v521 = vsel %vm520, %v495, 0.0
  %v522 = vadd.f32 %v519, %v521
  %v523 = vrot.slane %v522, 4
  %v524 = vadd.f32 %v522, %v523
  %v525 = vrot.slane %v524, 2
  %v526 = vadd.f32 %v524, %v525
  %v527 = vrot.slane %v526, 1
  %v528 = vadd.f32 %v526, %v527
  %530 = vrot.lane.b32.xlu0 %v528, 96
  %v531 = vpop.permute.xlu0 %530
  %v533 = vadd.f32 %v465, %v531
  %534 = vrot.lane.b32.xlu0 %v408, 64
  %v535 = vpop.permute.xlu0 %534
  %v537 = vsub.f32 %v142, %v535
  %v538 = vsub.f32 %v147, %v535
  %v539 = vsub.f32 %v152, %v535
  %v540 = vsub.f32 %v157, %v535
  %v541 = vsub.f32 %v162, %v535
  %v542 = vsub.f32 %v167, %v535
  %v543 = vsub.f32 %v172, %v535
  %v544 = vsub.f32 %v177, %v535
  %v545 = vsub.f32 %v182, %v535
  %v546 = vsub.f32 %v187, %v535
  %v547 = vsub.f32 %v192, %v535
  %v548 = vsub.f32 %v197, %v535
  %v549 = vsub.f32 %v202, %v535
  %v550 = vmul.f32 %v537, %v537
  %v551 = vmul.f32 %v538, %v538
  %v552 = vmul.f32 %v539, %v539
  %v553 = vmul.f32 %v540, %v540
  %v554 = vmul.f32 %v541, %v541
  %v555 = vmul.f32 %v542, %v542
  %v556 = vmul.f32 %v543, %v543
  %v557 = vmul.f32 %v544, %v544
  %v558 = vmul.f32 %v545, %v545
  %v559 = vmul.f32 %v546, %v546
  %v560 = vmul.f32 %v547, %v547
  %v561 = vmul.f32 %v548, %v548
  %v562 = vmul.f32 %v549, %v549
  %vm563 = vcmask 785920
  %v564 = vsel %vm563, %v550, 0.0
  %v565 = vsel %vm563, %v551, 0.0
  %v566 = vadd.f32 %v564, %v565
  %v567 = vsel %vm563, %v552, 0.0
  %v568 = vadd.f32 %v566, %v567
  %v569 = vsel %vm563, %v553, 0.0
  %v570 = vadd.f32 %v568, %v569
  %v571 = vsel %vm563, %v554, 0.0
  %v572 = vadd.f32 %v570, %v571
  %v573 = vsel %vm563, %v555, 0.0
  %v574 = vadd.f32 %v572, %v573
  %v575 = vsel %vm563, %v556, 0.0
  %v576 = vadd.f32 %v574, %v575
  %v577 = vsel %vm563, %v557, 0.0
  %v578 = vadd.f32 %v576, %v577
  %v579 = vsel %vm563, %v558, 0.0
  %v580 = vadd.f32 %v578, %v579
  %v581 = vsel %vm563, %v559, 0.0
  %v582 = vadd.f32 %v580, %v581
  %v583 = vsel %vm563, %v560, 0.0
  %v584 = vadd.f32 %v582, %v583
  %v585 = vsel %vm563, %v561, 0.0
  %v586 = vadd.f32 %v584, %v585
  %vm587 = vcmask 779776
  %v588 = vsel %vm587, %v562, 0.0
  %v589 = vadd.f32 %v586, %v588
  %v590 = vrot.slane %v589, 4
  %v591 = vadd.f32 %v589, %v590
  %v592 = vrot.slane %v591, 2
  %v593 = vadd.f32 %v591, %v592
  %v594 = vrot.slane %v593, 1
  %v595 = vadd.f32 %v593, %v594
  %597 = vrot.lane.b32.xlu0 %v595, 64
  %v598 = vpop.permute.xlu0 %597
  %v600 = vadd.f32 %v533, %v598
  %601 = vrot.lane.b32.xlu0 %v408, 96
  %v602 = vpop.permute.xlu0 %601
  %v604 = vsub.f32 %v142, %v602
  %v605 = vsub.f32 %v147, %v602
  %v606 = vsub.f32 %v152, %v602
  %v607 = vsub.f32 %v157, %v602
  %v608 = vsub.f32 %v162, %v602
  %v609 = vsub.f32 %v167, %v602
  %v610 = vsub.f32 %v172, %v602
  %v611 = vsub.f32 %v177, %v602
  %v612 = vsub.f32 %v182, %v602
  %v613 = vsub.f32 %v187, %v602
  %v614 = vsub.f32 %v192, %v602
  %v615 = vsub.f32 %v197, %v602
  %v616 = vsub.f32 %v202, %v602
  %v617 = vmul.f32 %v604, %v604
  %v618 = vmul.f32 %v605, %v605
  %v619 = vmul.f32 %v606, %v606
  %v620 = vmul.f32 %v607, %v607
  %v621 = vmul.f32 %v608, %v608
  %v622 = vmul.f32 %v609, %v609
  %v623 = vmul.f32 %v610, %v610
  %v624 = vmul.f32 %v611, %v611
  %v625 = vmul.f32 %v612, %v612
  %v626 = vmul.f32 %v613, %v613
  %v627 = vmul.f32 %v614, %v614
  %v628 = vmul.f32 %v615, %v615
  %v629 = vmul.f32 %v616, %v616
  %vm630 = vcmask 1048320
  %v631 = vsel %vm630, %v617, 0.0
  %v632 = vsel %vm630, %v618, 0.0
  %v633 = vadd.f32 %v631, %v632
  %v634 = vsel %vm630, %v619, 0.0
  %v635 = vadd.f32 %v633, %v634
  %v636 = vsel %vm630, %v620, 0.0
  %v637 = vadd.f32 %v635, %v636
  %v638 = vsel %vm630, %v621, 0.0
  %v639 = vadd.f32 %v637, %v638
  %v640 = vsel %vm630, %v622, 0.0
  %v641 = vadd.f32 %v639, %v640
  %v642 = vsel %vm630, %v623, 0.0
  %v643 = vadd.f32 %v641, %v642
  %v644 = vsel %vm630, %v624, 0.0
  %v645 = vadd.f32 %v643, %v644
  %v646 = vsel %vm630, %v625, 0.0
  %v647 = vadd.f32 %v645, %v646
  %v648 = vsel %vm630, %v626, 0.0
  %v649 = vadd.f32 %v647, %v648
  %v650 = vsel %vm630, %v627, 0.0
  %v651 = vadd.f32 %v649, %v650
  %v652 = vsel %vm630, %v628, 0.0
  %v653 = vadd.f32 %v651, %v652
  %vm654 = vcmask 1042176
  %v655 = vsel %vm654, %v629, 0.0
  %v656 = vadd.f32 %v653, %v655
  %v657 = vrot.slane %v656, 4
  %v658 = vadd.f32 %v656, %v657
  %v659 = vrot.slane %v658, 2
  %v660 = vadd.f32 %v658, %v659
  %v661 = vrot.slane %v660, 1
  %v662 = vadd.f32 %v660, %v661
  %664 = vrot.lane.b32.xlu0 %v662, 32
  %v665 = vpop.permute.xlu0 %664
  %v667 = vadd.f32 %v600, %v665
  %v668 = vmul.f32 %v667, %v407
  %v669 = vadd.f32 %v668, 1e-05
  %v670 = vrsqrt.pop %v669
  %v671 = vld [vmem:[%s2] sm:$0x1]
  %v672 = vmul.f32 %v671, %v670
  %v673 = vld [vmem:[%s3] sm:$0x1]
  %v674 = vmul.f32 %v408, %v672
  %v675 = vsub.f32 %v673, %v674
  %v677 = vlaneseq
  %v678 = vshrl.u32 %v677, 7
  %v679 = vsub.s32 0, %v678
  %v680 = vrot.slane %v672, %v679
  %681 = vrot.lane.b32.xlu0 %v680, 32
  %v682 = vpop.permute.xlu0 %681
  %684 = vrot.lane.b32.xlu0 %v680, 64
  %v685 = vpop.permute.xlu0 %684
  %687 = vrot.lane.b32.xlu0 %v680, 96
  %v688 = vpop.permute.xlu0 %687
  %v690 = vsel %vm374, %v672, %v682
  %vm691 = vcmask 523264
  %v692 = vsel %vm691, %v690, %v685
  %vm693 = vcmask 785408
  %v694 = vsel %vm693, %v692, %v688
  %v696 = vlaneseq
  %v697 = vshrl.u32 %v696, 7
  %v698 = vsub.s32 0, %v697
  %v699 = vrot.slane %v675, %v698
  %700 = vrot.lane.b32.xlu0 %v699, 32
  %v701 = vpop.permute.xlu0 %700
  %703 = vrot.lane.b32.xlu0 %v699, 64
  %v704 = vpop.permute.xlu0 %703
  %706 = vrot.lane.b32.xlu0 %v699, 96
  %v707 = vpop.permute.xlu0 %706
  %v709 = vsel %vm374, %v675, %v701
  %v710 = vsel %vm691, %v709, %v704
  %v711 = vsel %vm693, %v710, %v707
  %v712 = vlaneseq
  %v713 = vshrl.u32 %v712, 7
  %v714 = vsub.s32 0, %v713
  %v715 = vrot.slane %v694, %v714
  %v716 = vmul.f32 %v142, %v715
  %v717 = vmul.f32 %v147, %v715
  %v718 = vmul.f32 %v152, %v715
  %v719 = vmul.f32 %v157, %v715
  %v720 = vmul.f32 %v162, %v715
  %v721 = vmul.f32 %v167, %v715
  %v722 = vmul.f32 %v172, %v715
  %v723 = vmul.f32 %v177, %v715
  %v724 = vmul.f32 %v182, %v715
  %v725 = vmul.f32 %v187, %v715
  %v726 = vmul.f32 %v192, %v715
  %v727 = vmul.f32 %v197, %v715
  %v728 = vmul.f32 %v202, %v715
  %v729 = vlaneseq
  %v730 = vshrl.u32 %v729, 7
  %v731 = vsub.s32 0, %v730
  %v732 = vrot.slane %v711, %v731
  %v733 = vadd.f32 %v716, %v732
  %v734 = vadd.f32 %v717, %v732
  %v735 = vadd.f32 %v718, %v732
  %v736 = vadd.f32 %v719, %v732
  %v737 = vadd.f32 %v720, %v732
  %v738 = vadd.f32 %v721, %v732
  %v739 = vadd.f32 %v722, %v732
  %v740 = vadd.f32 %v723, %v732
  %v741 = vadd.f32 %v724, %v732
  %v742 = vadd.f32 %v725, %v732
  %v743 = vadd.f32 %v726, %v732
  %v744 = vadd.f32 %v727, %v732
  %v745 = vadd.f32 %v728, %v732
  %v746 = vmax.f32 %v733, 0.0
  %v747 = vmax.f32 %v734, 0.0
  %v748 = vmax.f32 %v735, 0.0
  %v749 = vmax.f32 %v736, 0.0
  %v750 = vmax.f32 %v737, 0.0
  %v751 = vmax.f32 %v738, 0.0
  %v752 = vmax.f32 %v739, 0.0
  %v753 = vmax.f32 %v740, 0.0
  %v754 = vmax.f32 %v741, 0.0
  %v755 = vmax.f32 %v742, 0.0
  %v756 = vmax.f32 %v743, 0.0
  %v757 = vmax.f32 %v744, 0.0
  %v758 = vmax.f32 %v745, 0.0
  %759 = vst [vmem:[%s4] sm:$0xff] %v746
  %760 = vst [vmem:[%s4 + $0x8] sm:$0xff] %v747
  %761 = vst [vmem:[%s4 + $0x10] sm:$0xff] %v748
  %762 = vst [vmem:[%s4 + $0x18] sm:$0xff] %v749
  %763 = vst [vmem:[%s4 + $0x20] sm:$0xff] %v750
  %764 = vst [vmem:[%s4 + $0x28] sm:$0xff] %v751
  %765 = vst [vmem:[%s4 + $0x30] sm:$0xff] %v752
  %766 = vst [vmem:[%s4 + $0x38] sm:$0xff] %v753
  %767 = vst [vmem:[%s4 + $0x40] sm:$0xff] %v754
  %768 = vst [vmem:[%s4 + $0x48] sm:$0xff] %v755
  %769 = vst [vmem:[%s4 + $0x50] sm:$0xff] %v756
  %770 = vst [vmem:[%s4 + $0x58] sm:$0xff] %v757
  %771 = vst [vmem:[%s4 + $0x60] sm:$0xff] %v758
  // Predicated region
  $region18: #{decoder_forward.6} parent=0 // pred_check
    _
  $region19: #{decoder_forward.6} parent=0 // pred_check_branch
    %773 = sbr.rel (0) target = $region21
  $region20: #{decoder_forward.6} parent=0 // pred_region
    _
  $region21: #{decoder_forward.6} parent=0 // pred_fallthru
    _
  // Predicated region
  $region22: #{decoder_forward.6} parent=0 // pred_check
    _
  $region23: #{decoder_forward.6} parent=0 // pred_check_branch
    %775 = sbr.rel (0) target = $region25
  $region24: #{decoder_forward.6} parent=0 // pred_region
    _
  $region25: #{decoder_forward.6} parent=0 // pred_fallthru
    _

// kernel: decoder_forward.7
$region0: #{decoder_forward.7}
  #allocation0 [shape = 'u32[]', space=smem, size = 0x4, offset = 0x4, fixed_abs, tag = 'smem constant byte address 0x4 - core index']
  #allocation1 [shape = 'u32[144,128]{1,0:T(1,128)}', space=vmem, size = 0x12000, scoped, tag = 'internal scratch']
  %s0 = inlined_call_operand.vmem [shape: f32[400,384], index: 0, kind: input, shape index: {}]
  %s1 = inlined_call_operand.vmem [shape: f32[384,128], index: 1, kind: input, shape index: {}]
  %s2 = inlined_call_operand.vmem [shape: f32[1,128], index: 2, kind: input, shape index: {}]
  %s3 = inlined_call_operand.vmem [shape: f32[400,128], index: 3, kind: output, shape index: {}]
  %s4 = sld [smem:[#allocation0]]
  $region45: #{decoder_forward.7} parent=0
    _
  %s6 = ssub.s32 1, %s4
  %s7 = scalar_select 0, %s6, %s4
  loop: start=0, step=1, limit=4
  $region2: #{decoder_forward.7} parent=0 // loop_pre_header
    _
  $region3: #{decoder_forward.7} parent=0 // loop_header
    %s9 = sphi 0, %s13
    %p10 = scmp.ge.s32.totalorder %s9, 4
    %s19 = sphi 0, %s21
    %s22 = sphi 0, %s19
    %s23 = sphi 0, %s22
    %s39 = sphi 0, %s23
    %s43 = sphi 0, %s43
    %s45 = sphi 0, %s43
    %s46 = sphi 0, %s45
    %s60 = sphi 0, %s46
    %s64 = sphi 0, %s64
    %s66 = sphi 0, %s64
    %s67 = sphi 0, %s66
    %s81 = sphi 0, %s67
    %s87 = sphi 0, %s89
    %s90 = sphi 0, %s87
    %s91 = sphi 0, %s90
    %s107 = sphi 0, %s91
  $region4: #{decoder_forward.7} parent=0 // loop_header_branch
    %12 = sbr.rel (%p10) target = $region8
  $region5: #{decoder_forward.7} parent=0 // loop_body
    %s14 = ssub.s32 %s9, 1
    %s15 = ssub.s32 %s9, 2
    %s16 = sadd.s32 %s9, 1
    %s17 = ssub.s32 %s9, %s16
    %p18 = scmp.eq.s32.totalorder %s17, 0
    %s20 = sadd.s32 %s19, 1
    %s21 = scalar_select %p18, %s19, %s20
    %p24 = pneg %p18
    %p25 = scmp.eq.s32.totalorder %s9, 1
    %p26 = por %p24, %p25
    %p27 = scmp.ne.s32.totalorder %s19, %s22
    %p28 = scmp.eq.s32.totalorder %s9, 0
    %p29 = por %p27, %p28
    %p30 = scmp.ne.s32.totalorder %s19, %s22
    %p31 = scmp.eq.s32.totalorder %s14, 1
    %p32 = por %p30, %p31
    %p33 = scmp.ne.s32.totalorder %s22, %s23
    %p34 = scmp.eq.s32.totalorder %s14, 0
    %p35 = por %p33, %p34
    %p36 = scmp.ne.s32.totalorder %s22, %s23
    %p37 = scmp.eq.s32.totalorder %s15, 1
    %p38 = por %p36, %p37
    %p40 = scmp.ne.s32.totalorder %s23, %s39
    %p41 = scmp.eq.s32.totalorder %s15, 0
    %p42 = por %p40, %p41
    %s44 = sadd.s32 %s43, 1
    %p47 = scmp.eq.s32.totalorder %s9, 1
    %p48 = scmp.ne.s32.totalorder %s43, %s45
    %p49 = scmp.eq.s32.totalorder %s9, 0
    %p50 = por %p48, %p49
    %p51 = scmp.ne.s32.totalorder %s43, %s45
    %p52 = scmp.eq.s32.totalorder %s14, 1
    %p53 = por %p51, %p52
    %p54 = scmp.ne.s32.totalorder %s45, %s46
    %p55 = scmp.eq.s32.totalorder %s14, 0
    %p56 = por %p54, %p55
    %p57 = scmp.ne.s32.totalorder %s45, %s46
    %p58 = scmp.eq.s32.totalorder %s15, 1
    %p59 = por %p57, %p58
    %p61 = scmp.ne.s32.totalorder %s46, %s60
    %p62 = scmp.eq.s32.totalorder %s15, 0
    %p63 = por %p61, %p62
    %s65 = sadd.s32 %s64, 1
    %p68 = scmp.eq.s32.totalorder %s9, 1
    %p69 = scmp.ne.s32.totalorder %s64, %s66
    %p70 = scmp.eq.s32.totalorder %s9, 0
    %p71 = por %p69, %p70
    %p72 = scmp.ne.s32.totalorder %s64, %s66
    %p73 = scmp.eq.s32.totalorder %s14, 1
    %p74 = por %p72, %p73
    %p75 = scmp.ne.s32.totalorder %s66, %s67
    %p76 = scmp.eq.s32.totalorder %s14, 0
    %p77 = por %p75, %p76
    %p78 = scmp.ne.s32.totalorder %s66, %s67
    %p79 = scmp.eq.s32.totalorder %s15, 1
    %p80 = por %p78, %p79
    %p82 = scmp.ne.s32.totalorder %s67, %s81
    %p83 = scmp.eq.s32.totalorder %s15, 0
    %p84 = por %p82, %p83
    %s85 = ssub.s32 %s9, %s16
    %p86 = scmp.eq.s32.totalorder %s85, 0
    %s88 = sadd.s32 %s87, 1
    %s89 = scalar_select %p86, %s87, %s88
    %p92 = pneg %p86
    %p93 = scmp.eq.s32.totalorder %s9, 1
    %p94 = por %p92, %p93
    %p95 = scmp.ne.s32.totalorder %s87, %s90
    %p96 = scmp.eq.s32.totalorder %s9, 0
    %p97 = por %p95, %p96
    %p98 = scmp.ne.s32.totalorder %s87, %s90
    %p99 = scmp.eq.s32.totalorder %s14, 1
    %p100 = por %p98, %p99
    %p101 = scmp.ne.s32.totalorder %s90, %s91
    %p102 = scmp.eq.s32.totalorder %s14, 0
    %p103 = por %p101, %p102
    %p104 = scmp.ne.s32.totalorder %s90, %s91
    %p105 = scmp.eq.s32.totalorder %s15, 1
    %p106 = por %p104, %p105
    %p108 = scmp.ne.s32.totalorder %s91, %s107
    %p109 = scmp.eq.s32.totalorder %s15, 0
    %p110 = por %p108, %p109
    %p111 = scmp.le.s32.totalorder 1, %s9
    %p112 = scmp.lt.s32.totalorder %s9, 3
    %p113 = pnand %p111, %p112
    %p114 = pneg %p113
    // Predicated region
    $region9: #{decoder_forward.7} parent=5 // pred_check
      _
    $region10: #{decoder_forward.7} parent=5 // pred_check_branch
      %116 = sbr.rel (%p113) target = $region12
    $region11: #{decoder_forward.7} parent=5 // pred_region
      %s117 = ssub.s32 %s9, 1
      // Predicated region
      $region13: #{decoder_forward.7} parent=11 // pred_check
        %p118 = pneg %p56
      $region14: #{decoder_forward.7} parent=11 // pred_check_branch
        %120 = sbr.rel (%p118) target = $region16
      $region15: #{decoder_forward.7} parent=11 // pred_region
        _
      $region16: #{decoder_forward.7} parent=11 // pred_fallthru
        _
      // Predicated region
      $region17: #{decoder_forward.7} parent=11 // pred_check
        %p121 = pneg %p77
      $region18: #{decoder_forward.7} parent=11 // pred_check_branch
        %123 = sbr.rel (%p121) target = $region20
      $region19: #{decoder_forward.7} parent=11 // pred_region
        _
      $region20: #{decoder_forward.7} parent=11 // pred_fallthru
        _
    $region12: #{decoder_forward.7} parent=5 // pred_fallthru
      _
    %p124 = scmp.lt.s32.totalorder %s9, 2
    // Predicated region
    $region21: #{decoder_forward.7} parent=5 // pred_check
      %p125 = pneg %p124
    $region22: #{decoder_forward.7} parent=5 // pred_check_branch
      %127 = sbr.rel (%p125) target = $region24
    $region23: #{decoder_forward.7} parent=5 // pred_region
      // Predicated region
      $region25: #{decoder_forward.7} parent=23 // pred_check
        %p128 = pneg %p29
      $region26: #{decoder_forward.7} parent=23 // pred_check_branch
        %130 = sbr.rel (%p128) target = $region28
      $region27: #{decoder_forward.7} parent=23 // pred_region
        %s131 = smul.u32 25, %s9
        %p132 = scmp.lt.s32.totalorder %s131, 49
        %s133 = scalar_select %p132, %s131, 49
        %s134 = smul.addr %s133, 3
        %s135 = smul.addr %s134, 8
        %s136 = scalar_lea.vmem %s0, %s135
        %s137 = smul.u32 25, %s9
      $region28: #{decoder_forward.7} parent=23 // pred_fallthru
        _
    $region24: #{decoder_forward.7} parent=5 // pred_fallthru
      _
    %p138 = scmp.le.s32.totalorder 1, %s9
    %p139 = scmp.lt.s32.totalorder %s9, 3
    %p140 = pnand %p138, %p139
    %p141 = pneg %p140
    // Predicated region
    $region29: #{decoder_forward.7} parent=5 // pred_check
      _
    $region30: #{decoder_forward.7} parent=5 // pred_check_branch
      %143 = sbr.rel (%p140) target = $region32
    $region31: #{decoder_forward.7} parent=5 // pred_region
      %s144 = ssub.s32 %s9, 1
      %s145 = smul.u32 25, %s14
      %p146 = scmp.lt.s32.totalorder %s145, 49
      %s147 = scalar_select %p146, %s145, 49
      %s148 = smul.addr %s147, 3
      %s149 = smul.addr %s148, 8
      %s150 = scalar_lea.vmem %s0, %s149
      %p151 = pneg %p35
      %p152 = pneg %p32
      %p153 = pneg %p56
      %p154 = pneg %p53
      %p155 = pneg %p77
      %p156 = pneg %p74
      %p157 = pneg %p103
      %p158 = pneg %p100
      %s159 = smul.u32 25, %s14
      %p160 = scmp.lt.s32.totalorder %s159, 49
      %s161 = scalar_select %p160, %s159, 49
      %s162 = smul.addr %s161, 8
      %s163 = scalar_lea.vmem %s3, %s162
      %s164 = smul.u32 25, %s14
      %p165 = scmp.lt.s32.totalorder %s164, 49
      %s166 = scalar_select %p165, %s164, 49
      %s167 = smul.addr %s166, 3
      %s168 = smul.addr %s167, 8
      %s169 = scalar_lea.vmem %s0, %s168
      %s170 = smul.u32 25, %s14
      %s171 = smul.u32 25, %s14
      %p172 = scmp.lt.s32.totalorder %s171, 49
      %s173 = scalar_select %p172, %s171, 49
      %s174 = smul.addr %s173, 8
      %s175 = scalar_lea.vmem %s3, %s174
      %s176 = smul.u32 25, %s14
      %v177 = vld [vmem:[%s169] sm:$0xff]
      %v178 = vld [vmem:[%s169 + $0x8] sm:$0xff]
      %v179 = vld [vmem:[%s169 + $0x10] sm:$0xff]
      %v180 = vld [vmem:[%s169 + $0x18] sm:$0xff]
      %v181 = vld [vmem:[%s169 + $0x20] sm:$0xff]
      %v182 = vld [vmem:[%s169 + $0x28] sm:$0xff]
      %v183 = vld [vmem:[%s169 + $0x30] sm:$0xff]
      %v184 = vld [vmem:[%s169 + $0x38] sm:$0xff]
      %v185 = vld [vmem:[%s169 + $0x40] sm:$0xff]
      %v186 = vld [vmem:[%s169 + $0x48] sm:$0xff]
      %v187 = vld [vmem:[%s169 + $0x50] sm:$0xff]
      %v188 = vld [vmem:[%s169 + $0x58] sm:$0xff]
      %v189 = vld [vmem:[%s169 + $0x60] sm:$0xff]
      %v190 = vld [vmem:[%s169 + $0x68] sm:$0xff]
      %v191 = vld [vmem:[%s169 + $0x70] sm:$0xff]
      %v192 = vld [vmem:[%s169 + $0x78] sm:$0xff]
      %v193 = vld [vmem:[%s169 + $0x80] sm:$0xff]
      %v194 = vld [vmem:[%s169 + $0x88] sm:$0xff]
      %v195 = vld [vmem:[%s169 + $0x90] sm:$0xff]
      %v196 = vld [vmem:[%s169 + $0x98] sm:$0xff]
      %v197 = vld [vmem:[%s169 + $0xa0] sm:$0xff]
      %v198 = vld [vmem:[%s169 + $0xa8] sm:$0xff]
      %v199 = vld [vmem:[%s169 + $0xb0] sm:$0xff]
      %v200 = vld [vmem:[%s169 + $0xb8] sm:$0xff]
      %v201 = vld [vmem:[%s169 + $0xc0] sm:$0xff]
      %v202 = vld [vmem:[%s169 + $0xc8] sm:$0xff]
      %v203 = vld [vmem:[%s169 + $0xd0] sm:$0xff]
      %v204 = vld [vmem:[%s169 + $0xd8] sm:$0xff]
      %v205 = vld [vmem:[%s169 + $0xe0] sm:$0xff]
      %v206 = vld [vmem:[%s169 + $0xe8] sm:$0xff]
      %v207 = vld [vmem:[%s169 + $0xf0] sm:$0xff]
      %v208 = vld [vmem:[%s169 + $0xf8] sm:$0xff]
      %v209 = vld [vmem:[%s169 + $0x100] sm:$0xff]
      %v210 = vld [vmem:[%s169 + $0x108] sm:$0xff]
      %v211 = vld [vmem:[%s169 + $0x110] sm:$0xff]
      %v212 = vld [vmem:[%s169 + $0x118] sm:$0xff]
      %v213 = vld [vmem:[%s169 + $0x120] sm:$0xff]
      %v214 = vld [vmem:[%s169 + $0x128] sm:$0xff]
      %v215 = vld [vmem:[%s169 + $0x130] sm:$0xff]
      %v216 = vld [vmem:[%s169 + $0x138] sm:$0xff]
      %v217 = vld [vmem:[%s169 + $0x140] sm:$0xff]
      %v218 = vld [vmem:[%s169 + $0x148] sm:$0xff]
      %v219 = vld [vmem:[%s169 + $0x150] sm:$0xff]
      %v220 = vld [vmem:[%s169 + $0x158] sm:$0xff]
      %v221 = vld [vmem:[%s169 + $0x160] sm:$0xff]
      %v222 = vld [vmem:[%s169 + $0x168] sm:$0xff]
      %v223 = vld [vmem:[%s169 + $0x170] sm:$0xff]
      %v224 = vld [vmem:[%s169 + $0x178] sm:$0xff]
      %v225 = vld [vmem:[%s169 + $0x180] sm:$0xff]
      %v226 = vld [vmem:[%s169 + $0x188] sm:$0xff]
      %v227 = vld [vmem:[%s169 + $0x190] sm:$0xff]
      %v228 = vld [vmem:[%s169 + $0x198] sm:$0xff]
      %v229 = vld [vmem:[%s169 + $0x1a0] sm:$0xff]
      %v230 = vld [vmem:[%s169 + $0x1a8] sm:$0xff]
      %v231 = vld [vmem:[%s169 + $0x1b0] sm:$0xff]
      %v232 = vld [vmem:[%s169 + $0x1b8] sm:$0xff]
      %v233 = vld [vmem:[%s169 + $0x1c0] sm:$0xff]
      %v234 = vld [vmem:[%s169 + $0x1c8] sm:$0xff]
      %v235 = vld [vmem:[%s169 + $0x1d0] sm:$0xff]
      %v236 = vld [vmem:[%s169 + $0x1d8] sm:$0xff]
      %v237 = vld [vmem:[%s169 + $0x1e0] sm:$0xff]
      %v238 = vld [vmem:[%s169 + $0x1e8] sm:$0xff]
      %v239 = vld [vmem:[%s169 + $0x1f0] sm:$0xff]
      %v240 = vld [vmem:[%s169 + $0x1f8] sm:$0xff]
      %v241 = vld [vmem:[%s169 + $0x200] sm:$0xff]
      %v242 = vld [vmem:[%s169 + $0x208] sm:$0xff]
      %v243 = vld [vmem:[%s169 + $0x210] sm:$0xff]
      %v244 = vld [vmem:[%s169 + $0x218] sm:$0xff]
      %v245 = vld [vmem:[%s169 + $0x220] sm:$0xff]
      %v246 = vld [vmem:[%s169 + $0x228] sm:$0xff]
      %v247 = vld [vmem:[%s169 + $0x230] sm:$0xff]
      %v248 = vld [vmem:[%s169 + $0x238] sm:$0xff]
      %v249 = vld [vmem:[%s169 + $0x240] sm:$0xff]
      %v250 = vld [vmem:[%s169 + $0x248] sm:$0xff]
      %v251 = vld [vmem:[%s169 + $0x250] sm:$0xff]
      %v252 = vld [vmem:[%s1] sm:$0xff]
      %v253 = vld [vmem:[%s1 + $0x8] sm:$0xff]
      %v254 = vld [vmem:[%s1 + $0x10] sm:$0xff]
      %v255 = vld [vmem:[%s1 + $0x18] sm:$0xff]
      %v256 = vld [vmem:[%s1 + $0x20] sm:$0xff]
      %v257 = vld [vmem:[%s1 + $0x28] sm:$0xff]
      %v258 = vld [vmem:[%s1 + $0x30] sm:$0xff]
      %v259 = vld [vmem:[%s1 + $0x38] sm:$0xff]
      %v260 = vld [vmem:[%s1 + $0x40] sm:$0xff]
      %v261 = vld [vmem:[%s1 + $0x48] sm:$0xff]
      %v262 = vld [vmem:[%s1 + $0x50] sm:$0xff]
      %v263 = vld [vmem:[%s1 + $0x58] sm:$0xff]
      %v264 = vld [vmem:[%s1 + $0x60] sm:$0xff]
      %v265 = vld [vmem:[%s1 + $0x68] sm:$0xff]
      %v266 = vld [vmem:[%s1 + $0x70] sm:$0xff]
      %v267 = vld [vmem:[%s1 + $0x78] sm:$0xff]
      %v268 = vld [vmem:[%s1 + $0x80] sm:$0xff]
      %v269 = vld [vmem:[%s1 + $0x88] sm:$0xff]
      %v270 = vld [vmem:[%s1 + $0x90] sm:$0xff]
      %v271 = vld [vmem:[%s1 + $0x98] sm:$0xff]
      %v272 = vld [vmem:[%s1 + $0xa0] sm:$0xff]
      %v273 = vld [vmem:[%s1 + $0xa8] sm:$0xff]
      %v274 = vld [vmem:[%s1 + $0xb0] sm:$0xff]
      %v275 = vld [vmem:[%s1 + $0xb8] sm:$0xff]
      %v276 = vld [vmem:[%s1 + $0xc0] sm:$0xff]
      %v277 = vld [vmem:[%s1 + $0xc8] sm:$0xff]
      %v278 = vld [vmem:[%s1 + $0xd0] sm:$0xff]
      %v279 = vld [vmem:[%s1 + $0xd8] sm:$0xff]
      %v280 = vld [vmem:[%s1 + $0xe0] sm:$0xff]
      %v281 = vld [vmem:[%s1 + $0xe8] sm:$0xff]
      %v282 = vld [vmem:[%s1 + $0xf0] sm:$0xff]
      %v283 = vld [vmem:[%s1 + $0xf8] sm:$0xff]
      %v284 = vld [vmem:[%s1 + $0x100] sm:$0xff]
      %v285 = vld [vmem:[%s1 + $0x108] sm:$0xff]
      %v286 = vld [vmem:[%s1 + $0x110] sm:$0xff]
      %v287 = vld [vmem:[%s1 + $0x118] sm:$0xff]
      %v288 = vld [vmem:[%s1 + $0x120] sm:$0xff]
      %v289 = vld [vmem:[%s1 + $0x128] sm:$0xff]
      %v290 = vld [vmem:[%s1 + $0x130] sm:$0xff]
      %v291 = vld [vmem:[%s1 + $0x138] sm:$0xff]
      %v292 = vld [vmem:[%s1 + $0x140] sm:$0xff]
      %v293 = vld [vmem:[%s1 + $0x148] sm:$0xff]
      %v294 = vld [vmem:[%s1 + $0x150] sm:$0xff]
      %v295 = vld [vmem:[%s1 + $0x158] sm:$0xff]
      %v296 = vld [vmem:[%s1 + $0x160] sm:$0xff]
      %v297 = vld [vmem:[%s1 + $0x168] sm:$0xff]
      %v298 = vld [vmem:[%s1 + $0x170] sm:$0xff]
      %v299 = vld [vmem:[%s1 + $0x178] sm:$0xff]
      %v300 = vld [vmem:[%s2] sm:$0x1]
      %v302 = vlaneseq
      %v303 = vshrl.u32 %v302, 7
      %v304 = vsub.s32 0, %v303
      %v305 = vrot.slane %v300, %v304
      %307 = vmatprep.subr.mxu0 0.0
      %308 = vmatpush1.msra.mxu0 %v252
      %309 = vmatprep.subr.mxu0 0.0
      %310 = vmatpush1.msra.mxu0 %v253
      %311 = vmatprep.subr.mxu0 0.0
      %312 = vmatpush1.msra.mxu0 %v254
      %313 = vmatprep.subr.mxu0 0.0
      %314 = vmatpush1.msra.mxu0 %v255
      %315 = vmatprep.subr.mxu0 0.0
      %316 = vmatpush1.msra.mxu0 %v256
      %317 = vmatprep.subr.mxu0 0.0
      %318 = vmatpush1.msra.mxu0 %v257
      %319 = vmatprep.subr.mxu0 0.0
      %320 = vmatpush1.msra.mxu0 %v258
      %321 = vmatprep.subr.mxu0 0.0
      %322 = vmatpush1.msra.mxu0 %v259
      %323 = vmatprep.subr.mxu0 0.0
      %324 = vmatpush1.msra.mxu0 %v260
      %325 = vmatprep.subr.mxu0 0.0
      %326 = vmatpush1.msra.mxu0 %v261
      %327 = vmatprep.subr.mxu0 0.0
      %328 = vmatpush1.msra.mxu0 %v262
      %329 = vmatprep.subr.mxu0 0.0
      %330 = vmatpush1.msra.mxu0 %v263
      %331 = vmatprep.subr.mxu0 0.0
      %332 = vmatpush1.msra.mxu0 %v264
      %333 = vmatprep.subr.mxu0 0.0
      %334 = vmatpush1.msra.mxu0 %v265
      %335 = vmatprep.subr.mxu0 0.0
      %336 = vmatpush1.msra.mxu0 %v266
      %337 = vmatprep.subr.mxu0 0.0
      %338 = vmatpush1.msra.mxu0 %v267
      %339 = vmatprep.subr.mxu0 0.0
      %340 = vmatpush1.msra.mxu0 %v268
      %341 = vmatprep.subr.mxu0 0.0
      %342 = vmatpush1.msra.mxu0 %v269
      %343 = vmatprep.subr.mxu0 0.0
      %344 = vmatpush1.msra.mxu0 %v270
      %345 = vmatprep.subr.mxu0 0.0
      %346 = vmatpush1.msra.mxu0 %v271
      %347 = vmatprep.subr.mxu0 0.0
      %348 = vmatpush1.msra.mxu0 %v272
      %349 = vmatprep.subr.mxu0 0.0
      %350 = vmatpush1.msra.mxu0 %v273
      %351 = vmatprep.subr.mxu0 0.0
      %352 = vmatpush1.msra.mxu0 %v274
      %353 = vmatprep.subr.mxu0 0.0
      %354 = vmatpush1.msra.mxu0 %v275
      %355 = vmatprep.subr.mxu0 0.0
      %356 = vmatpush1.msra.mxu0 %v276
      %357 = vmatprep.subr.mxu0 0.0
      %358 = vmatpush1.msra.mxu0 %v277
      %359 = vmatprep.subr.mxu0 0.0
      %360 = vmatpush1.msra.mxu0 %v278
      %361 = vmatprep.subr.mxu0 0.0
      %362 = vmatpush1.msra.mxu0 %v279
      %363 = vmatprep.subr.mxu0 0.0
      %364 = vmatpush1.msra.mxu0 %v280
      %365 = vmatprep.subr.mxu0 0.0
      %366 = vmatpush1.msra.mxu0 %v281
      %367 = vmatprep.subr.mxu0 0.0
      %368 = vmatpush1.msra.mxu0 %v282
      %369 = vmatprep.subr.mxu0 0.0
      %370 = vmatpush1.msra.mxu0 %v283
      %371 = vmatprep.mubr.f32.mxu0 %v178
      %372 = vmatmul.mubr.f32.gmra.mrb[0].mxu0 %v177
      %v373 = vpop.f32.mrb[0].mxu0
      %v374 = vadd.f32 %v305, %v373
      %v375 = vpop.f32.mrb[0].mxu0
      %376 = vmatprep.mubr.f32.mxu0 %v181
      %377 = vmatmul.mubr.f32.gmra.mrb[0].mxu0 %v180
      %v378 = vpop.f32.mrb[0].mxu0
      %v379 = vadd.f32 %v305, %v378
      %v380 = vpop.f32.mrb[0].mxu0
      %381 = vmatprep.mubr.f32.mxu0 %v184
      %382 = vmatmul.mubr.f32.gmra.mrb[0].mxu0 %v183
      %v383 = vpop.f32.mrb[0].mxu0
      %v384 = vadd.f32 %v305, %v383
      %v385 = vpop.f32.mrb[0].mxu0
      %386 = vmatprep.mubr.f32.mxu0 %v187
      %387 = vmatmul.mubr.f32.gmra.mrb[0].mxu0 %v186
      %v388 = vpop.f32.mrb[0].mxu0
      %v389 = vadd.f32 %v305, %v388
      %v390 = vpop.f32.mrb[0].mxu0
      %391 = vmatprep.mubr.f32.mxu0 %v190
      %392 = vmatmul.mubr.f32.gmra.mrb[0].mxu0 %v189
      %v393 = vpop.f32.mrb[0].mxu0
      %v394 = vadd.f32 %v305, %v393
      %v395 = vpop.f32.mrb[0].mxu0
      %396 = vmatprep.mubr.f32.mxu0 %v193
      %397 = vmatmul.mubr.f32.gmra.mrb[0].mxu0 %v192
      %v398 = vpop.f32.mrb[0].mxu0
      %v399 = vadd.f32 %v305, %v398
      %v400 = vpop.f32.mrb[0].mxu0
      %401 = vmatprep.mubr.f32.mxu0 %v196
      %402 = vmatmul.mubr.f32.gmra.mrb[0].mxu0 %v195
      %v403 = vpop.f32.mrb[0].mxu0
      %v404 = vadd.f32 %v305, %v403
      %v405 = vpop.f32.mrb[0].mxu0
      %406 = vmatprep.mubr.f32.mxu0 %v199
      %407 = vmatmul.mubr.f32.gmra.mrb[0].mxu0 %v198
      %v408 = vpop.f32.mrb[0].mxu0
      %v409 = vadd.f32 %v305, %v408
      %v410 = vpop.f32.mrb[0].mxu0
      %411 = vmatprep.mubr.f32.mxu0 %v202
      %412 = vmatmul.mubr.f32.gmra.mrb[0].mxu0 %v201
      %v413 = vpop.f32.mrb[0].mxu0
      %v414 = vadd.f32 %v305, %v413
      %v415 = vpop.f32.mrb[0].mxu0
      %416 = vmatprep.mubr.f32.mxu0 %v205
      %417 = vmatmul.mubr.f32.gmra.mrb[0].mxu0 %v204
      %v418 = vpop.f32.mrb[0].mxu0
      %v419 = vadd.f32 %v305, %v418
      %v420 = vpop.f32.mrb[0].mxu0
      %421 = vmatprep.mubr.f32.mxu0 %v208
      %422 = vmatmul.mubr.f32.gmra.mrb[0].mxu0 %v207
      %v423 = vpop.f32.mrb[0].mxu0
      %v424 = vadd.f32 %v305, %v423
      %v425 = vpop.f32.mrb[0].mxu0
      %426 = vmatprep.mubr.f32.mxu0 %v211
      %427 = vmatmul.mubr.f32.gmra.mrb[0].mxu0 %v210
      %v428 = vpop.f32.mrb[0].mxu0
      %v429 = vadd.f32 %v305, %v428
      %v430 = vpop.f32.mrb[0].mxu0
      %431 = vmatprep.mubr.f32.mxu0 %v214
      %432 = vmatmul.mubr.f32.gmra.mrb[0].mxu0 %v213
      %v433 = vpop.f32.mrb[0].mxu0
      %v434 = vadd.f32 %v305, %v433
      %v435 = vpop.f32.mrb[0].mxu0
      %436 = vmatprep.mubr.f32.mxu0 %v217
      %437 = vmatmul.mubr.f32.gmra.mrb[0].mxu0 %v216
      %v438 = vpop.f32.mrb[0].mxu0
      %v439 = vadd.f32 %v305, %v438
      %v440 = vpop.f32.mrb[0].mxu0
      %441 = vmatprep.mubr.f32.mxu0 %v220
      %442 = vmatmul.mubr.f32.gmra.mrb[0].mxu0 %v219
      %v443 = vpop.f32.mrb[0].mxu0
      %v444 = vadd.f32 %v305, %v443
      %v445 = vpop.f32.mrb[0].mxu0
      %446 = vmatprep.mubr.f32.mxu0 %v223
      %447 = vmatmul.mubr.f32.gmra.mrb[0].mxu0 %v222
      %v448 = vpop.f32.mrb[0].mxu0
      %v449 = vadd.f32 %v305, %v448
      %v450 = vpop.f32.mrb[0].mxu0
      %451 = vmatprep.mubr.f32.mxu0 %v226
      %452 = vmatmul.mubr.f32.gmra.mrb[0].mxu0 %v225
      %v453 = vpop.f32.mrb[0].mxu0
      %v454 = vadd.f32 %v305, %v453
      %v455 = vpop.f32.mrb[0].mxu0
      %456 = vmatprep.mubr.f32.mxu0 %v229
      %457 = vmatmul.mubr.f32.gmra.mrb[0].mxu0 %v228
      %v458 = vpop.f32.mrb[0].mxu0
      %v459 = vadd.f32 %v305, %v458
      %v460 = vpop.f32.mrb[0].mxu0
      %461 = vmatprep.mubr.f32.mxu0 %v232
      %462 = vmatmul.mubr.f32.gmra.mrb[0].mxu0 %v231
      %v463 = vpop.f32.mrb[0].mxu0
      %v464 = vadd.f32 %v305, %v463
      %v465 = vpop.f32.mrb[0].mxu0
      %466 = vmatprep.mubr.f32.mxu0 %v235
      %467 = vmatmul.mubr.f32.gmra.mrb[0].mxu0 %v234
      %v468 = vpop.f32.mrb[0].mxu0
      %v469 = vadd.f32 %v305, %v468
      %v470 = vpop.f32.mrb[0].mxu0
      %471 = vmatprep.mubr.f32.mxu0 %v238
      %472 = vmatmul.mubr.f32.gmra.mrb[0].mxu0 %v237
      %v473 = vpop.f32.mrb[0].mxu0
      %v474 = vadd.f32 %v305, %v473
      %v475 = vpop.f32.mrb[0].mxu0
      %476 = vmatprep.mubr.f32.mxu0 %v241
      %477 = vmatmul.mubr.f32.gmra.mrb[0].mxu0 %v240
      %v478 = vpop.f32.mrb[0].mxu0
      %v479 = vadd.f32 %v305, %v478
      %v480 = vpop.f32.mrb[0].mxu0
      %481 = vmatprep.mubr.f32.mxu0 %v244
      %482 = vmatmul.mubr.f32.gmra.mrb[0].mxu0 %v243
      %v483 = vpop.f32.mrb[0].mxu0
      %v484 = vadd.f32 %v305, %v483
      %v485 = vpop.f32.mrb[0].mxu0
      %486 = vmatprep.mubr.f32.mxu0 %v247
      %487 = vmatmul.mubr.f32.gmra.mrb[0].mxu0 %v246
      %v488 = vpop.f32.mrb[0].mxu0
      %v489 = vadd.f32 %v305, %v488
      %v490 = vpop.f32.mrb[0].mxu0
      %491 = vmatprep.mubr.f32.mxu0 %v250
      %492 = vmatmul.mubr.f32.gmra.mrb[0].mxu0 %v249
      %v493 = vpop.f32.mrb[0].mxu0
      %v494 = vadd.f32 %v305, %v493
      %v495 = vpop.f32.mrb[0].mxu0
      %496 = vdwg.mxu0
      %497 = vmatprep.subr.mxu0 0.0
      %498 = vmatpush1.msra.mxu0 %v284
      %499 = vmatprep.subr.mxu0 0.0
      %500 = vmatpush1.msra.mxu0 %v285
      %501 = vmatprep.subr.mxu0 0.0
      %502 = vmatpush1.msra.mxu0 %v286
      %503 = vmatprep.subr.mxu0 0.0
      %504 = vmatpush1.msra.mxu0 %v287
      %505 = vmatprep.subr.mxu0 0.0
      %506 = vmatpush1.msra.mxu0 %v288
      %507 = vmatprep.subr.mxu0 0.0
      %508 = vmatpush1.msra.mxu0 %v289
      %509 = vmatprep.subr.mxu0 0.0
      %510 = vmatpush1.msra.mxu0 %v290
      %511 = vmatprep.subr.mxu0 0.0
      %512 = vmatpush1.msra.mxu0 %v291
      %513 = vmatprep.subr.mxu0 0.0
      %514 = vmatpush1.msra.mxu0 %v292
      %515 = vmatprep.subr.mxu0 0.0
      %516 = vmatpush1.msra.mxu0 %v293
      %517 = vmatprep.subr.mxu0 0.0
      %518 = vmatpush1.msra.mxu0 %v294
      %519 = vmatprep.subr.mxu0 0.0
      %520 = vmatpush1.msra.mxu0 %v295
      %521 = vmatprep.subr.mxu0 0.0
      %522 = vmatpush1.msra.mxu0 %v296
      %523 = vmatprep.subr.mxu0 0.0
      %524 = vmatpush1.msra.mxu0 %v297
      %525 = vmatprep.subr.mxu0 0.0
      %526 = vmatpush1.msra.mxu0 %v298
      %527 = vmatprep.subr.mxu0 0.0
      %528 = vmatpush1.msra.mxu0 %v299
      %529 = vmatprep.subr.mxu0 0.0
      %530 = vmatpush1.msra.mxu0 0.0
      %531 = vmatprep.subr.mxu0 0.0
      %532 = vmatpush1.msra.mxu0 0.0
      %533 = vmatprep.subr.mxu0 0.0
      %534 = vmatpush1.msra.mxu0 0.0
      %535 = vmatprep.subr.mxu0 0.0
      %536 = vmatpush1.msra.mxu0 0.0
      %537 = vmatprep.subr.mxu0 0.0
      %538 = vmatpush1.msra.mxu0 0.0
      %539 = vmatprep.subr.mxu0 0.0
      %540 = vmatpush1.msra.mxu0 0.0
      %541 = vmatprep.subr.mxu0 0.0
      %542 = vmatpush1.msra.mxu0 0.0
      %543 = vmatprep.subr.mxu0 0.0
      %544 = vmatpush1.msra.mxu0 0.0
      %545 = vmatprep.subr.mxu0 0.0
      %546 = vmatpush1.msra.mxu0 0.0
      %547 = vmatprep.subr.mxu0 0.0
      %548 = vmatpush1.msra.mxu0 0.0
      %549 = vmatprep.subr.mxu0 0.0
      %550 = vmatpush1.msra.mxu0 0.0
      %551 = vmatprep.subr.mxu0 0.0
      %552 = vmatpush1.msra.mxu0 0.0
      %553 = vmatprep.subr.mxu0 0.0
      %554 = vmatpush1.msra.mxu0 0.0
      %555 = vmatprep.subr.mxu0 0.0
      %556 = vmatpush1.msra.mxu0 0.0
      %557 = vmatprep.subr.mxu0 0.0
      %558 = vmatpush1.msra.mxu0 0.0
      %559 = vmatprep.subr.mxu0 0.0
      %560 = vmatpush1.msra.mxu0 0.0
      %561 = vmatprep.mubr.f32.mxu0 0.0
      %562 = vmatmul.mubr.f32.gmra.mrb[0].mxu0 %v179
      %v563 = vpop.f32.mrb[0].mxu0
      %v564 = vadd.f32 %v374, %v563
      %v565 = vpop.f32.mrb[0].mxu0
      %566 = vmatprep.mubr.f32.mxu0 0.0
      %567 = vmatmul.mubr.f32.gmra.mrb[0].mxu0 %v182
      %v568 = vpop.f32.mrb[0].mxu0
      %v569 = vadd.f32 %v379, %v568
      %v570 = vpop.f32.mrb[0].mxu0
      %571 = vmatprep.mubr.f32.mxu0 0.0
      %572 = vmatmul.mubr.f32.gmra.mrb[0].mxu0 %v185
      %v573 = vpop.f32.mrb[0].mxu0
      %v574 = vadd.f32 %v384, %v573
      %v575 = vpop.f32.mrb[0].mxu0
      %576 = vmatprep.mubr.f32.mxu0 0.0
      %577 = vmatmul.mubr.f32.gmra.mrb[0].mxu0 %v188
      %v578 = vpop.f32.mrb[0].mxu0
      %v579 = vadd.f32 %v389, %v578
      %v580 = vpop.f32.mrb[0].mxu0
      %581 = vmatprep.mubr.f32.mxu0 0.0
      %582 = vmatmul.mubr.f32.gmra.mrb[0].mxu0 %v191
      %v583 = vpop.f32.mrb[0].mxu0
      %v584 = vadd.f32 %v394, %v583
      %v585 = vpop.f32.mrb[0].mxu0
      %586 = vmatprep.mubr.f32.mxu0 0.0
      %587 = vmatmul.mubr.f32.gmra.mrb[0].mxu0 %v194
      %v588 = vpop.f32.mrb[0].mxu0
      %v589 = vadd.f32 %v399, %v588
      %v590 = vpop.f32.mrb[0].mxu0
      %591 = vmatprep.mubr.f32.mxu0 0.0
      %592 = vmatmul.mubr.f32.gmra.mrb[0].mxu0 %v197
      %v593 = vpop.f32.mrb[0].mxu0
      %v594 = vadd.f32 %v404, %v593
      %v595 = vpop.f32.mrb[0].mxu0
      %596 = vmatprep.mubr.f32.mxu0 0.0
      %597 = vmatmul.mubr.f32.gmra.mrb[0].mxu0 %v200
      %v598 = vpop.f32.mrb[0].mxu0
      %v599 = vadd.f32 %v409, %v598
      %v600 = vpop.f32.mrb[0].mxu0
      %601 = vmatprep.mubr.f32.mxu0 0.0
      %602 = vmatmul.mubr.f32.gmra.mrb[0].mxu0 %v203
      %v603 = vpop.f32.mrb[0].mxu0
      %v604 = vadd.f32 %v414, %v603
      %v605 = vpop.f32.mrb[0].mxu0
      %606 = vmatprep.mubr.f32.mxu0 0.0
      %607 = vmatmul.mubr.f32.gmra.mrb[0].mxu0 %v206
      %v608 = vpop.f32.mrb[0].mxu0
      %v609 = vadd.f32 %v419, %v608
      %v610 = vpop.f32.mrb[0].mxu0
      %611 = vmatprep.mubr.f32.mxu0 0.0
      %612 = vmatmul.mubr.f32.gmra.mrb[0].mxu0 %v209
      %v613 = vpop.f32.mrb[0].mxu0
      %v614 = vadd.f32 %v424, %v613
      %v615 = vpop.f32.mrb[0].mxu0
      %616 = vmatprep.mubr.f32.mxu0 0.0
      %617 = vmatmul.mubr.f32.gmra.mrb[0].mxu0 %v212
      %v618 = vpop.f32.mrb[0].mxu0
      %v619 = vadd.f32 %v429, %v618
      %v620 = vpop.f32.mrb[0].mxu0
      %621 = vmatprep.mubr.f32.mxu0 0.0
      %622 = vmatmul.mubr.f32.gmra.mrb[0].mxu0 %v215
      %v623 = vpop.f32.mrb[0].mxu0
      %v624 = vadd.f32 %v434, %v623
      %v625 = vpop.f32.mrb[0].mxu0
      %626 = vmatprep.mubr.f32.mxu0 0.0
      %627 = vmatmul.mubr.f32.gmra.mrb[0].mxu0 %v218
      %v628 = vpop.f32.mrb[0].mxu0
      %v629 = vadd.f32 %v439, %v628
      %v630 = vpop.f32.mrb[0].mxu0
      %631 = vmatprep.mubr.f32.mxu0 0.0
      %632 = vmatmul.mubr.f32.gmra.mrb[0].mxu0 %v221
      %v633 = vpop.f32.mrb[0].mxu0
      %v634 = vadd.f32 %v444, %v633
      %v635 = vpop.f32.mrb[0].mxu0
      %636 = vmatprep.mubr.f32.mxu0 0.0
      %637 = vmatmul.mubr.f32.gmra.mrb[0].mxu0 %v224
      %v638 = vpop.f32.mrb[0].mxu0
      %v639 = vadd.f32 %v449, %v638
      %v640 = vpop.f32.mrb[0].mxu0
      %641 = vmatprep.mubr.f32.mxu0 0.0
      %642 = vmatmul.mubr.f32.gmra.mrb[0].mxu0 %v227
      %v643 = vpop.f32.mrb[0].mxu0
      %v644 = vadd.f32 %v454, %v643
      %v645 = vpop.f32.mrb[0].mxu0
      %646 = vmatprep.mubr.f32.mxu0 0.0
      %647 = vmatmul.mubr.f32.gmra.mrb[0].mxu0 %v230
      %v648 = vpop.f32.mrb[0].mxu0
      %v649 = vadd.f32 %v459, %v648
      %v650 = vpop.f32.mrb[0].mxu0
      %651 = vmatprep.mubr.f32.mxu0 0.0
      %652 = vmatmul.mubr.f32.gmra.mrb[0].mxu0 %v233
      %v653 = vpop.f32.mrb[0].mxu0
      %v654 = vadd.f32 %v464, %v653
      %v655 = vpop.f32.mrb[0].mxu0
      %656 = vmatprep.mubr.f32.mxu0 0.0
      %657 = vmatmul.mubr.f32.gmra.mrb[0].mxu0 %v236
      %v658 = vpop.f32.mrb[0].mxu0
      %v659 = vadd.f32 %v469, %v658
      %v660 = vpop.f32.mrb[0].mxu0
      %661 = vmatprep.mubr.f32.mxu0 0.0
      %662 = vmatmul.mubr.f32.gmra.mrb[0].mxu0 %v239
      %v663 = vpop.f32.mrb[0].mxu0
      %v664 = vadd.f32 %v474, %v663
      %v665 = vpop.f32.mrb[0].mxu0
      %666 = vmatprep.mubr.f32.mxu0 0.0
      %667 = vmatmul.mubr.f32.gmra.mrb[0].mxu0 %v242
      %v668 = vpop.f32.mrb[0].mxu0
      %v669 = vadd.f32 %v479, %v668
      %v670 = vpop.f32.mrb[0].mxu0
      %671 = vmatprep.mubr.f32.mxu0 0.0
      %672 = vmatmul.mubr.f32.gmra.mrb[0].mxu0 %v245
      %v673 = vpop.f32.mrb[0].mxu0
      %v674 = vadd.f32 %v484, %v673
      %v675 = vpop.f32.mrb[0].mxu0
      %676 = vmatprep.mubr.f32.mxu0 0.0
      %677 = vmatmul.mubr.f32.gmra.mrb[0].mxu0 %v248
      %v678 = vpop.f32.mrb[0].mxu0
      %v679 = vadd.f32 %v489, %v678
      %v680 = vpop.f32.mrb[0].mxu0
      %681 = vmatprep.mubr.f32.mxu0 0.0
      %682 = vmatmul.mubr.f32.gmra.mrb[0].mxu0 %v251
      %v683 = vpop.f32.mrb[0].mxu0
      %v684 = vadd.f32 %v494, %v683
      %v685 = vpop.f32.mrb[0].mxu0
      %686 = vdwg.mxu0
      %v687 = vxor.u32 %v564, 2147483648
      %v688 = vxor.u32 %v569, 2147483648
      %v689 = vxor.u32 %v574, 2147483648
      %v690 = vxor.u32 %v579, 2147483648
      %v691 = vxor.u32 %v584, 2147483648
      %v692 = vxor.u32 %v589, 2147483648
      %v693 = vxor.u32 %v594, 2147483648
      %v694 = vxor.u32 %v599, 2147483648
      %v695 = vxor.u32 %v604, 2147483648
      %v696 = vxor.u32 %v609, 2147483648
      %v697 = vxor.u32 %v614, 2147483648
      %v698 = vxor.u32 %v619, 2147483648
      %v699 = vxor.u32 %v624, 2147483648
      %v700 = vxor.u32 %v629, 2147483648
      %v701 = vxor.u32 %v634, 2147483648
      %v702 = vxor.u32 %v639, 2147483648
      %v703 = vxor.u32 %v644, 2147483648
      %v704 = vxor.u32 %v649, 2147483648
      %v705 = vxor.u32 %v654, 2147483648
      %v706 = vxor.u32 %v659, 2147483648
      %v707 = vxor.u32 %v664, 2147483648
      %v708 = vxor.u32 %v669, 2147483648
      %v709 = vxor.u32 %v674, 2147483648
      %v710 = vxor.u32 %v679, 2147483648
      %v711 = vxor.u32 %v684, 2147483648
      %v712 = vmul.f32 %v687, 1.442695
      %v713 = vpow.pop %v712
      %v714 = vmul.f32 %v688, 1.442695
      %v715 = vpow.pop %v714
      %v716 = vmul.f32 %v689, 1.442695
      %v717 = vpow.pop %v716
      %v718 = vmul.f32 %v690, 1.442695
      %v719 = vpow.pop %v718
      %v720 = vmul.f32 %v691, 1.442695
      %v721 = vpow.pop %v720
      %v722 = vmul.f32 %v692, 1.442695
      %v723 = vpow.pop %v722
      %v724 = vmul.f32 %v693, 1.442695
      %v725 = vpow.pop %v724
      %v726 = vmul.f32 %v694, 1.442695
      %v727 = vpow.pop %v726
      %v728 = vmul.f32 %v695, 1.442695
      %v729 = vpow.pop %v728
      %v730 = vmul.f32 %v696, 1.442695
      %v731 = vpow.pop %v730
      %v732 = vmul.f32 %v697, 1.442695
      %v733 = vpow.pop %v732
      %v734 = vmul.f32 %v698, 1.442695
      %v735 = vpow.pop %v734
      %v736 = vmul.f32 %v699, 1.442695
      %v737 = vpow.pop %v736
      %v738 = vmul.f32 %v700, 1.442695
      %v739 = vpow.pop %v738
      %v740 = vmul.f32 %v701, 1.442695
      %v741 = vpow.pop %v740
      %v742 = vmul.f32 %v702, 1.442695
      %v743 = vpow.pop %v742
      %v744 = vmul.f32 %v703, 1.442695
      %v745 = vpow.pop %v744
      %v746 = vmul.f32 %v704, 1.442695
      %v747 = vpow.pop %v746
      %v748 = vmul.f32 %v705, 1.442695
      %v749 = vpow.pop %v748
      %v750 = vmul.f32 %v706, 1.442695
      %v751 = vpow.pop %v750
      %v752 = vmul.f32 %v707, 1.442695
      %v753 = vpow.pop %v752
      %v754 = vmul.f32 %v708, 1.442695
      %v755 = vpow.pop %v754
      %v756 = vmul.f32 %v709, 1.442695
      %v757 = vpow.pop %v756
      %v758 = vmul.f32 %v710, 1.442695
      %v759 = vpow.pop %v758
      %v760 = vmul.f32 %v711, 1.442695
      %v761 = vpow.pop %v760
      %v762 = vadd.f32 %v713, 1.0
      %v763 = vadd.f32 %v715, 1.0
      %v764 = vadd.f32 %v717, 1.0
      %v765 = vadd.f32 %v719, 1.0
      %v766 = vadd.f32 %v721, 1.0
      %v767 = vadd.f32 %v723, 1.0
      %v768 = vadd.f32 %v725, 1.0
      %v769 = vadd.f32 %v727, 1.0
      %v770 = vadd.f32 %v729, 1.0
      %v771 = vadd.f32 %v731, 1.0
      %v772 = vadd.f32 %v733, 1.0
      %v773 = vadd.f32 %v735, 1.0
      %v774 = vadd.f32 %v737, 1.0
      %v775 = vadd.f32 %v739, 1.0
      %v776 = vadd.f32 %v741, 1.0
      %v777 = vadd.f32 %v743, 1.0
      %v778 = vadd.f32 %v745, 1.0
      %v779 = vadd.f32 %v747, 1.0
      %v780 = vadd.f32 %v749, 1.0
      %v781 = vadd.f32 %v751, 1.0
      %v782 = vadd.f32 %v753, 1.0
      %v783 = vadd.f32 %v755, 1.0
      %v784 = vadd.f32 %v757, 1.0
      %v785 = vadd.f32 %v759, 1.0
      %v786 = vadd.f32 %v761, 1.0
      %v787 = vrcp.pop %v762
      %v788 = vmul.f32 1.0, %v787
      %v789 = vrcp.pop %v763
      %v790 = vmul.f32 1.0, %v789
      %v791 = vrcp.pop %v764
      %v792 = vmul.f32 1.0, %v791
      %v793 = vrcp.pop %v765
      %v794 = vmul.f32 1.0, %v793
      %v795 = vrcp.pop %v766
      %v796 = vmul.f32 1.0, %v795
      %v797 = vrcp.pop %v767
      %v798 = vmul.f32 1.0, %v797
      %v799 = vrcp.pop %v768
      %v800 = vmul.f32 1.0, %v799
      %v801 = vrcp.pop %v769
      %v802 = vmul.f32 1.0, %v801
      %v803 = vrcp.pop %v770
      %v804 = vmul.f32 1.0, %v803
      %v805 = vrcp.pop %v771
      %v806 = vmul.f32 1.0, %v805
      %v807 = vrcp.pop %v772
      %v808 = vmul.f32 1.0, %v807
      %v809 = vrcp.pop %v773
      %v810 = vmul.f32 1.0, %v809
      %v811 = vrcp.pop %v774
      %v812 = vmul.f32 1.0, %v811
      %v813 = vrcp.pop %v775
      %v814 = vmul.f32 1.0, %v813
      %v815 = vrcp.pop %v776
      %v816 = vmul.f32 1.0, %v815
      %v817 = vrcp.pop %v777
      %v818 = vmul.f32 1.0, %v817
      %v819 = vrcp.pop %v778
      %v820 = vmul.f32 1.0, %v819
      %v821 = vrcp.pop %v779
      %v822 = vmul.f32 1.0, %v821
      %v823 = vrcp.pop %v780
      %v824 = vmul.f32 1.0, %v823
      %v825 = vrcp.pop %v781
      %v826 = vmul.f32 1.0, %v825
      %v827 = vrcp.pop %v782
      %v828 = vmul.f32 1.0, %v827
      %v829 = vrcp.pop %v783
      %v830 = vmul.f32 1.0, %v829
      %v831 = vrcp.pop %v784
      %v832 = vmul.f32 1.0, %v831
      %v833 = vrcp.pop %v785
      %v834 = vmul.f32 1.0, %v833
      %v835 = vrcp.pop %v786
      %v836 = vmul.f32 1.0, %v835
      %837 = vst [vmem:[%s175] sm:$0xff] %v788
      %838 = vst [vmem:[%s175 + $0x8] sm:$0xff] %v790
      %839 = vst [vmem:[%s175 + $0x10] sm:$0xff] %v792
      %840 = vst [vmem:[%s175 + $0x18] sm:$0xff] %v794
      %841 = vst [vmem:[%s175 + $0x20] sm:$0xff] %v796
      %842 = vst [vmem:[%s175 + $0x28] sm:$0xff] %v798
      %843 = vst [vmem:[%s175 + $0x30] sm:$0xff] %v800
      %844 = vst [vmem:[%s175 + $0x38] sm:$0xff] %v802
      %845 = vst [vmem:[%s175 + $0x40] sm:$0xff] %v804
      %846 = vst [vmem:[%s175 + $0x48] sm:$0xff] %v806
      %847 = vst [vmem:[%s175 + $0x50] sm:$0xff] %v808
      %848 = vst [vmem:[%s175 + $0x58] sm:$0xff] %v810
      %849 = vst [vmem:[%s175 + $0x60] sm:$0xff] %v812
      %850 = vst [vmem:[%s175 + $0x68] sm:$0xff] %v814
      %851 = vst [vmem:[%s175 + $0x70] sm:$0xff] %v816
      %852 = vst [vmem:[%s175 + $0x78] sm:$0xff] %v818
      %853 = vst [vmem:[%s175 + $0x80] sm:$0xff] %v820
      %854 = vst [vmem:[%s175 + $0x88] sm:$0xff] %v822
      %855 = vst [vmem:[%s175 + $0x90] sm:$0xff] %v824
      %856 = vst [vmem:[%s175 + $0x98] sm:$0xff] %v826
      %857 = vst [vmem:[%s175 + $0xa0] sm:$0xff] %v828
      %858 = vst [vmem:[%s175 + $0xa8] sm:$0xff] %v830
      %859 = vst [vmem:[%s175 + $0xb0] sm:$0xff] %v832
      %860 = vst [vmem:[%s175 + $0xb8] sm:$0xff] %v834
      %861 = vst [vmem:[%s175 + $0xc0] sm:$0xff] %v836
      %s862 = smul.u32 25, %s14
      %p863 = scmp.lt.s32.totalorder %s862, 49
      %s864 = scalar_select %p863, %s862, 49
      %s865 = smul.addr %s864, 8
      %s866 = scalar_lea.vmem %s3, %s865
      // Predicated region
      $region33: #{decoder_forward.7} parent=31 // pred_check
        %p867 = pneg %p100
      $region34: #{decoder_forward.7} parent=31 // pred_check_branch
        %869 = sbr.rel (%p867) target = $region36
      $region35: #{decoder_forward.7} parent=31 // pred_region
        %s870 = smul.u32 25, %s14
      $region36: #{decoder_forward.7} parent=31 // pred_fallthru
        _
    $region32: #{decoder_forward.7} parent=5 // pred_fallthru
      _
    %p871 = scmp.le.s32.totalorder 2, %s9
    // Predicated region
    $region37: #{decoder_forward.7} parent=5 // pred_check
      %p872 = pneg %p871
    $region38: #{decoder_forward.7} parent=5 // pred_check_branch
      %874 = sbr.rel (%p872) target = $region40
    $region39: #{decoder_forward.7} parent=5 // pred_region
      %s875 = ssub.s32 %s9, 2
      // Predicated region
      $region41: #{decoder_forward.7} parent=39 // pred_check
        %p876 = pneg %p106
      $region42: #{decoder_forward.7} parent=39 // pred_check_branch
        %878 = sbr.rel (%p876) target = $region44
      $region43: #{decoder_forward.7} parent=39 // pred_region
        %s879 = smul.u32 25, %s15
        %p880 = scmp.lt.s32.totalorder %s879, 49
        %s881 = scalar_select %p880, %s879, 49
        %s882 = smul.addr %s881, 8
        %s883 = scalar_lea.vmem %s3, %s882
      $region44: #{decoder_forward.7} parent=39 // pred_fallthru
        _
    $region40: #{decoder_forward.7} parent=5 // pred_fallthru
      _
  $region6: #{decoder_forward.7} parent=0 // loop_footer
    %s13 = sadd.s32 1, %s9
  $region7: #{decoder_forward.7} parent=0 // loop_footer_branch
    %8 = sbr.rel target = $region3
  $region8: #{decoder_forward.7} parent=0 // loop_exit
    _

</llo_original>
